<compile_context>
chip_gen: v6e
topology: v6e:2x2x1
jax: 0.10.0
libtpu: 0.0.40
codegen_flags: <defaults>
</compile_context>

<pallas_src>
import math
from functools import partial

import jax
import jax.numpy as jnp
from jax.experimental import pallas as pl
from jax.experimental.pallas import tpu as pltpu


# ---------------------------------------------------------------------------
# Fused whole-model kernel: one grid step = one (batch element, layer)
# ---------------------------------------------------------------------------

def _lcm_fused_kernel(src_ref, pos_ref,
                      wqkv_ref, bqkv_ref, wo_ref, bo_ref, ln1g_ref, ln1b_ref,
                      w1_ref, b1_ref, w2_ref, b2_ref, ln2g_ref, ln2b_ref,
                      ow_ref, ob_ref,
                      o_ref, x_s,
                      *, nhead, eps):
    l = pl.program_id(1)
    num_layers = pl.num_programs(1)

    # Layer 0: load src slab and fuse the positional-embedding add.
    @pl.when(l == 0)
    def _():
        x_s[...] = src_ref[0] + pos_ref[...]

    x = x_s[...]                                    # [S, D] f32 (VMEM-resident residual stream)
    S, D = x.shape
    H = nhead
    dh = D // H

    # ---------------- attention half ----------------
    # Fused head-major QKV projection: one batched dot over G = 3H batches.
    # (1/sqrt(dh) is already folded into the Q weights/bias.)
    xb = x.astype(jnp.bfloat16)
    xg = jnp.broadcast_to(xb[None, :, :], (3 * H, S, D))                 # [3H, S, D]
    qkv = jnp.einsum('gsd,gde->gse', xg, wqkv_ref[0],
                     preferred_element_type=jnp.float32) + bqkv_ref[0]   # [3H, S, dh] f32
    q = qkv[:H]                                     # leading-dim slices: no lane relayout
    k = qkv[H:2 * H]
    v = qkv[2 * H:]

    # Causal mask (equivalent to PyTorch's additive -inf square subsequent mask).
    row = jax.lax.broadcasted_iota(jnp.int32, (S, S), 0)
    col = jax.lax.broadcasted_iota(jnp.int32, (S, S), 1)
    causal = (col <= row)[None, :, :]               # [1, S, S]

    s = jnp.einsum('hqe,hke->hqk', q.astype(jnp.bfloat16), k.astype(jnp.bfloat16),
                   preferred_element_type=jnp.float32)                   # [H, S, S]
    s = jnp.where(causal, s, -1e30)
    m = jnp.max(s, axis=-1, keepdims=True)
    p = jnp.exp(s - m)
    p = p * pl.reciprocal(jnp.sum(p, axis=-1, keepdims=True), approx=True)

    ctx = jnp.einsum('hqk,hke->hqe', p.astype(jnp.bfloat16), v.astype(jnp.bfloat16),
                     preferred_element_type=jnp.float32)                 # [H, S, dh]

    # Head merge folded into the out-projection: batched dot + cheap sum over heads
    # (no concatenate / lane relayout).
    attn = jnp.einsum('hqe,hed->hqd', ctx.astype(jnp.bfloat16), wo_ref[0],
                      preferred_element_type=jnp.float32)                # [H, S, D]
    attn = jnp.sum(attn, axis=0) + bo_ref[0]                             # [S, D]

    y = x + attn                                    # residual (f32)
    mu = jnp.mean(y, axis=-1, keepdims=True)
    var = jnp.mean((y - mu) * (y - mu), axis=-1, keepdims=True)
    x1 = (y - mu) * jax.lax.rsqrt(var + eps) * ln1g_ref[0] + ln1b_ref[0]

    # ---------------- FFN half ----------------
    h = jnp.dot(x1.astype(jnp.bfloat16), w1_ref[0],
                preferred_element_type=jnp.float32) + b1_ref[0]          # [S, DFF]
    h = jnp.maximum(h, 0.0)                          # ReLU
    f = jnp.dot(h.astype(jnp.bfloat16), w2_ref[0],
                preferred_element_type=jnp.float32) + b2_ref[0]          # [S, D]
    y2 = x1 + f
    mu2 = jnp.mean(y2, axis=-1, keepdims=True)
    var2 = jnp.mean((y2 - mu2) * (y2 - mu2), axis=-1, keepdims=True)
    x2 = (y2 - mu2) * jax.lax.rsqrt(var2 + eps) * ln2g_ref[0] + ln2b_ref[0]

    # Carry the activation to the next layer step (same batch element).
    x_s[...] = x2

    # Final layer: fused output projection; the output block index only changes with
    # the batch axis, so HBM writeback happens exactly once per batch element.
    @pl.when(l == num_layers - 1)
    def _():
        o_ref[0] = jnp.dot(x2.astype(jnp.bfloat16), ow_ref[...],
                           preferred_element_type=jnp.float32) + ob_ref[...]


def _vmem_limit_bytes(S, D, DFF, H):
    """Scoped-VMEM budget derived from the actual block sizes (capped for v7x)."""
    dh = D // H
    layer_w = 2 * (3 * H * D * dh + H * dh * D + D * DFF + DFF * D)      # bf16 weights
    layer_b = 4 * (3 * H * dh + 6 * D + DFF)                             # f32 biases / LN
    const = 4 * S * D + 2 * D * D + 4 * D                                # pos, out_w, out_b
    io = 4 * S * D * 2                                                   # src + out blocks
    work = 4 * (6 * H * S * dh + 2 * H * S * S + S * DFF + 8 * S * D)    # f32 working set
    est = 2 * (layer_w + layer_b + const + io) + work + (8 << 20)        # double-buffer + slack
    # Floor at the v6e/v7x default; cap at v7x's 64 MiB physical VMEM per TensorCore.
    return int(max(32 << 20, min(est, 64 << 20)))


def one_tower_lcm_forward(src, params, nhead, eps=1e-5):
    B, S, D = src.shape
    H = nhead
    L = params["wqkv"].shape[0]
    DFF = params["w1"].shape[-1]
    assert params["wqkv"].shape[1] == 3 * H and D % H == 0

    pos = params["pos_emb"][:S]                     # [S, D]; added inside the layer-0 step

    x_spec = pl.BlockSpec((1, S, D), lambda b, l: (b, 0, 0))

    def layer_spec(arr):
        # Stacked per-layer parameter: one layer's slab per grid step, auto-pipelined
        # (next layer's weights prefetched while the current layer computes).
        shp = arr.shape[1:]
        return pl.BlockSpec((1,) + shp, lambda b, l: (l,) + (0,) * len(shp))

    def const_spec(arr):
        # Grid-invariant (broadcast) input: DMA'd once, stays VMEM-resident.
        # NOTE: on v7x, single-buffering these (pipeline_mode=pl.Buffered(1)) halves
        # their VMEM footprint at large D; left at the default here.
        shp = arr.shape
        return pl.BlockSpec(shp, lambda b, l: (0,) * len(shp))

    layer_keys = ("wqkv", "bqkv", "wo", "bo", "ln1_g", "ln1_b",
                  "w1", "b1", "w2", "b2", "ln2_g", "ln2_b")
    layer_args = [params[k] for k in layer_keys]
    const_args = [params["out_w"], params["out_b"]]

    return pl.pallas_call(
        partial(_lcm_fused_kernel, nhead=H, eps=eps),
        out_shape=jax.ShapeDtypeStruct((B, S, D), jnp.float32),
        grid=(B, L),
        in_specs=[x_spec, const_spec(pos)]
                 + [layer_spec(a) for a in layer_args]
                 + [const_spec(a) for a in const_args],
        out_specs=x_spec,
        scratch_shapes=[pltpu.VMEM((S, D), jnp.float32)],   # residual stream carried over layers
        compiler_params=pltpu.CompilerParams(
            dimension_semantics=("parallel", "arbitrary"),   # batch across TCs, layers sequential
            vmem_limit_bytes=_vmem_limit_bytes(S, D, DFF, H)),
    )(src.astype(jnp.float32), pos, *layer_args, *const_args)


# ---------------------------------------------------------------------------
# Parameter init (head-major, layer-stacked layout expected by the kernel)
# ---------------------------------------------------------------------------

def init_params(key, d_model, nhead, num_layers, dim_ff, max_pos=50, w_scale=0.02):
    D, H, L, DFF = d_model, nhead, num_layers, dim_ff
    dh = D // H
    ks = jax.random.split(key, 10)

    def nrm(k, shape):
        return (w_scale * jax.random.normal(k, shape)).astype(jnp.float32)

    # Fold the 1/sqrt(dh) attention scale into the Q projection (free at init time).
    q_scale = jnp.concatenate([jnp.full((H,), 1.0 / math.sqrt(dh)),
                               jnp.ones((2 * H,))]).reshape(1, 3 * H, 1, 1)
    wqkv = nrm(ks[0], (L, 3 * H, D, dh)) * q_scale
    bqkv = nrm(ks[1], (L, 3 * H, 1, dh)) * q_scale

    return {
        "pos_emb": nrm(ks[2], (max_pos, D)),
        # matmul weights stored head-major / pre-transposed and in bf16 (MXU operands);
        # biases and LayerNorm params stay f32.
        "wqkv": wqkv.astype(jnp.bfloat16),          # [L, 3H, D, dh]  (q,k,v head-major)
        "bqkv": bqkv,                               # [L, 3H, 1, dh]
        "wo": nrm(ks[3], (L, H, dh, D)).astype(jnp.bfloat16),
        "bo": nrm(ks[4], (L, 1, D)),
        "ln1_g": jnp.ones((L, 1, D), jnp.float32),
        "ln1_b": jnp.zeros((L, 1, D), jnp.float32),
        "w1": nrm(ks[5], (L, D, DFF)).astype(jnp.bfloat16),
        "b1": nrm(ks[6], (L, 1, DFF)),
        "w2": nrm(ks[7], (L, DFF, D)).astype(jnp.bfloat16),
        "b2": nrm(ks[8], (L, 1, D)),
        "ln2_g": jnp.ones((L, 1, D), jnp.float32),
        "ln2_b": jnp.zeros((L, 1, D), jnp.float32),
        "out_w": nrm(ks[9], (D, D)).astype(jnp.bfloat16),
        "out_b": jnp.zeros((1, D), jnp.float32),
    }


# ---------------------------------------------------------------------------
# Pure-JAX reference (f32, exact softmax) for a correctness sanity check
# ---------------------------------------------------------------------------

def reference_forward(src, params, nhead, eps=1e-5):
    B, S, D = src.shape
    H = nhead
    L = params["wqkv"].shape[0]
    x = src.astype(jnp.float32) + params["pos_emb"][:S][None]
    causal = (jnp.arange(S)[None, :] <= jnp.arange(S)[:, None])

    def ln(y, g, b):
        mu = jnp.mean(y, -1, keepdims=True)
        var = jnp.mean((y - mu) ** 2, -1, keepdims=True)
        return (y - mu) / jnp.sqrt(var + eps) * g + b

    for l in range(L):
        wqkv = params["wqkv"][l].astype(jnp.float32)
        qkv = jnp.einsum('bsd,gde->bgse', x, wqkv) + params["bqkv"][l][None]
        q, k, v = qkv[:, :H], qkv[:, H:2 * H], qkv[:, 2 * H:]
        s = jnp.einsum('bhqe,bhke->bhqk', q, k)
        s = jnp.where(causal[None, None], s, -jnp.inf)
        p = jax.nn.softmax(s, axis=-1)
        ctx = jnp.einsum('bhqk,bhke->bhqe', p, v)
        attn = jnp.einsum('bhqe,hed->bqd', ctx,
                          params["wo"][l].astype(jnp.float32)) + params["bo"][l][None]
        x = ln(x + attn, params["ln1_g"][l][None], params["ln1_b"][l][None])
        h = jnp.maximum(x @ params["w1"][l].astype(jnp.float32) + params["b1"][l][None], 0.0)
        f = h @ params["w2"][l].astype(jnp.float32) + params["b2"][l][None]
        x = ln(x + f, params["ln2_g"][l][None], params["ln2_b"][l][None])
    return x @ params["out_w"].astype(jnp.float32) + params["out_b"][None]


if __name__ == "__main__":
    # Small, forward-consistent shapes: batch=2, seq=8, d_model=32, nhead=4,
    # num_layers=2, dim_feedforward=64.
    B, S, D, H, L, DFF = 2, 8, 32, 4, 2, 64

    key = jax.random.PRNGKey(0)
    k_src, k_par = jax.random.split(key)
    src = jax.random.normal(k_src, (B, S, D), dtype=jnp.float32)
    params = init_params(k_par, D, H, L, DFF)

    fwd = jax.jit(partial(one_tower_lcm_forward, nhead=H))
    out = jax.block_until_ready(fwd(src, params))

    assert out.shape == (B, S, D) and out.dtype == jnp.float32
    assert bool(jnp.all(jnp.isfinite(out)))

    ref = reference_forward(src, params, H)
    max_err = float(jnp.max(jnp.abs(out - ref)))
    # bf16 MXU operands + approximate softmax reciprocal -> loose tolerance vs f32 ref.
    assert max_err < 5e-2, f"max abs err vs reference: {max_err}"

    print("KERNEL_OK")
</pallas_src>

<mosaic_0001>
module attributes {stable_mosaic.version = 11 : i64} {
  func.func @_lcm_fused_kernel(%arg0: i32, %arg1: i32, %arg2: memref<1x8x32xf32, #tpu.memory_space<vmem>>, %arg3: memref<8x32xf32, #tpu.memory_space<vmem>>, %arg4: memref<1x12x32x8xbf16, #tpu.memory_space<vmem>>, %arg5: memref<1x12x1x8xf32, #tpu.memory_space<vmem>>, %arg6: memref<1x4x8x32xbf16, #tpu.memory_space<vmem>>, %arg7: memref<1x1x32xf32, #tpu.memory_space<vmem>>, %arg8: memref<1x1x32xf32, #tpu.memory_space<vmem>>, %arg9: memref<1x1x32xf32, #tpu.memory_space<vmem>>, %arg10: memref<1x32x64xbf16, #tpu.memory_space<vmem>>, %arg11: memref<1x1x64xf32, #tpu.memory_space<vmem>>, %arg12: memref<1x64x32xbf16, #tpu.memory_space<vmem>>, %arg13: memref<1x1x32xf32, #tpu.memory_space<vmem>>, %arg14: memref<1x1x32xf32, #tpu.memory_space<vmem>>, %arg15: memref<1x1x32xf32, #tpu.memory_space<vmem>>, %arg16: memref<32x32xbf16, #tpu.memory_space<vmem>>, %arg17: memref<1x32xf32, #tpu.memory_space<vmem>>, %arg18: memref<1x8x32xf32, #tpu.memory_space<vmem>>, %arg19: memref<8x32xf32, #tpu.memory_space<vmem>>) attributes {dimension_semantics = [#tpu.dimension_semantics<parallel>, #tpu.dimension_semantics<arbitrary>], iteration_bounds = array<i64: 2, 2>, scalar_prefetch = 0 : i64, scratch_operands = 1 : i64, tpu.core_type = #tpu.core_type<tc>, window_params = [{transform_indices = @transform_0, window_bounds = array<i64: 1, 8, 32>}, {pipeline_mode = #tpu.pipeline_mode<synchronous>, transform_indices = @transform_1, window_bounds = array<i64: 8, 32>}, {transform_indices = @transform_2, window_bounds = array<i64: 1, 12, 32, 8>}, {transform_indices = @transform_3, window_bounds = array<i64: 1, 12, 1, 8>}, {transform_indices = @transform_4, window_bounds = array<i64: 1, 4, 8, 32>}, {transform_indices = @transform_5, window_bounds = array<i64: 1, 1, 32>}, {transform_indices = @transform_6, window_bounds = array<i64: 1, 1, 32>}, {transform_indices = @transform_7, window_bounds = array<i64: 1, 1, 32>}, {transform_indices = @transform_8, window_bounds = array<i64: 1, 32, 64>}, {transform_indices = @transform_9, window_bounds = array<i64: 1, 1, 64>}, {transform_indices = @transform_10, window_bounds = array<i64: 1, 64, 32>}, {transform_indices = @transform_11, window_bounds = array<i64: 1, 1, 32>}, {transform_indices = @transform_12, window_bounds = array<i64: 1, 1, 32>}, {transform_indices = @transform_13, window_bounds = array<i64: 1, 1, 32>}, {pipeline_mode = #tpu.pipeline_mode<synchronous>, transform_indices = @transform_14, window_bounds = array<i64: 32, 32>}, {pipeline_mode = #tpu.pipeline_mode<synchronous>, transform_indices = @transform_15, window_bounds = array<i64: 1, 32>}, {transform_indices = @transform_16, window_bounds = array<i64: 1, 8, 32>}]} {
    %c0_i32 = arith.constant 0 : i32
    %0 = arith.cmpi eq, %arg1, %c0_i32 : i32
    %1 = arith.extui %0 : i1 to i32
    %c0_i32_0 = arith.constant 0 : i32
    %2 = arith.cmpi ne, %1, %c0_i32_0 : i32
    scf.if %2 {
      %c0_64 = arith.constant 0 : index
      %c0_65 = arith.constant 0 : index
      %c0_66 = arith.constant 0 : index
      %131 = vector.load %arg2[%c0_64, %c0_65, %c0_66] : memref<1x8x32xf32, #tpu.memory_space<vmem>>, vector<1x8x32xf32>
      %132 = vector.shape_cast %131 : vector<1x8x32xf32> to vector<8x32xf32>
      %c0_67 = arith.constant 0 : index
      %c0_68 = arith.constant 0 : index
      %133 = vector.load %arg3[%c0_67, %c0_68] : memref<8x32xf32, #tpu.memory_space<vmem>>, vector<8x32xf32>
      %134 = arith.addf %132, %133 : vector<8x32xf32>
      %c0_69 = arith.constant 0 : index
      %c0_70 = arith.constant 0 : index
      %135 = vector.load %arg19[%c0_69, %c0_70] : memref<8x32xf32, #tpu.memory_space<vmem>>, vector<8x32xf32>
      tpu.vector_store %arg19[%c0_69, %c0_70], %134 {strides = array<i32>} : memref<8x32xf32, #tpu.memory_space<vmem>>, vector<8x32xf32>,
    } else {
    }
    %c0 = arith.constant 0 : index
    %c0_1 = arith.constant 0 : index
    %3 = vector.load %arg19[%c0, %c0_1] : memref<8x32xf32, #tpu.memory_space<vmem>>, vector<8x32xf32>
    %4 = arith.truncf %3 : vector<8x32xf32> to vector<8x32xbf16>
    %5 = vector.shape_cast %4 : vector<8x32xbf16> to vector<1x8x32xbf16>
    %6 = vector.shape_cast %5 : vector<1x8x32xbf16> to vector<1x8x32xbf16>
    %7 = vector.broadcast %6 : vector<1x8x32xbf16> to vector<12x8x32xbf16>
    %c0_2 = arith.constant 0 : index
    %c0_3 = arith.constant 0 : index
    %c0_4 = arith.constant 0 : index
    %c0_5 = arith.constant 0 : index
    %8 = vector.load %arg4[%c0_2, %c0_3, %c0_4, %c0_5] : memref<1x12x32x8xbf16, #tpu.memory_space<vmem>>, vector<1x12x32x8xbf16>
    %9 = vector.shape_cast %8 : vector<1x12x32x8xbf16> to vector<12x32x8xbf16>
    "tpu.trace_start"() <{level = 10 : i32, message = "gsd,gde->gse"}> : () -> ()
    %cst = arith.constant dense<0.000000e+00> : vector<12x8x8xf32>
    %10 = tpu.matmul %7, %9, %cst {dimension_numbers = #tpu.dot_dimension_numbers<[2], [1], [1], [2], [0, 0, 0, 1, 1, 2], [0], [0]>} : vector<12x8x32xbf16>, vector<12x32x8xbf16>, vector<12x8x8xf32> -> vector<12x8x8xf32>
    "tpu.trace_stop"() : () -> ()
    %c0_6 = arith.constant 0 : index
    %c0_7 = arith.constant 0 : index
    %c0_8 = arith.constant 0 : index
    %c0_9 = arith.constant 0 : index
    %11 = vector.load %arg5[%c0_6, %c0_7, %c0_8, %c0_9] : memref<1x12x1x8xf32, #tpu.memory_space<vmem>>, vector<1x12x1x8xf32>
    %12 = vector.shape_cast %11 : vector<1x12x1x8xf32> to vector<12x1x8xf32>
    %13 = vector.broadcast %12 : vector<12x1x8xf32> to vector<12x8x8xf32>
    %14 = arith.addf %10, %13 : vector<12x8x8xf32>
    %15 = vector.extract_strided_slice %14 {offsets = [0, 0, 0], sizes = [4, 8, 8], strides = [1, 1, 1]} : vector<12x8x8xf32> to vector<4x8x8xf32>
    %16 = vector.extract_strided_slice %14 {offsets = [4, 0, 0], sizes = [4, 8, 8], strides = [1, 1, 1]} : vector<12x8x8xf32> to vector<4x8x8xf32>
    %17 = vector.extract_strided_slice %14 {offsets = [8, 0, 0], sizes = [4, 8, 8], strides = [1, 1, 1]} : vector<12x8x8xf32> to vector<4x8x8xf32>
    %18 = tpu.iota {dimensions = array<i32: 0>} : vector<8x8xi32>
    %19 = tpu.iota {dimensions = array<i32: 1>} : vector<8x8xi32>
    %20 = arith.cmpi sle, %19, %18 : vector<8x8xi32>
    %21 = vector.shape_cast %20 : vector<8x8xi1> to vector<1x8x8xi1>
    %22 = arith.truncf %15 : vector<4x8x8xf32> to vector<4x8x8xbf16>
    %23 = arith.truncf %16 : vector<4x8x8xf32> to vector<4x8x8xbf16>
    "tpu.trace_start"() <{level = 10 : i32, message = "hqe,hke->hqk"}> : () -> ()
    %cst_10 = arith.constant dense<0.000000e+00> : vector<4x8x8xf32>
    %24 = tpu.matmul %22, %23, %cst_10 {dimension_numbers = #tpu.dot_dimension_numbers<[2], [2], [1], [1], [0, 0, 0, 1, 1, 1], [0], [0]>} : vector<4x8x8xbf16>, vector<4x8x8xbf16>, vector<4x8x8xf32> -> vector<4x8x8xf32>
    %cst_11 = arith.constant -1.000000e+30 : f32
    "tpu.trace_stop"() : () -> ()
    %25 = vector.shape_cast %21 : vector<1x8x8xi1> to vector<1x8x8xi1>
    %26 = vector.broadcast %25 : vector<1x8x8xi1> to vector<4x8x8xi1>
    %27 = vector.broadcast %cst_11 : f32 to vector<4x8x8xf32>
    %28 = arith.select %26, %24, %27 : vector<4x8x8xi1>, vector<4x8x8xf32>
    %cst_12 = arith.constant dense<0xFF800000> : vector<4x8xf32>
    %29 = vector.multi_reduction <maximumf>, %28, %cst_12 [2] : vector<4x8x8xf32> to vector<4x8xf32>
    %30 = vector.shape_cast %29 : vector<4x8xf32> to vector<4x8x1xf32>
    %31 = vector.broadcast %30 : vector<4x8x1xf32> to vector<4x8x8xf32>
    %32 = arith.subf %28, %31 : vector<4x8x8xf32>
    %33 = math.exp %32 : vector<4x8x8xf32>
    %cst_13 = arith.constant dense<0.000000e+00> : vector<4x8xf32>
    %34 = vector.multi_reduction <add>, %33, %cst_13 [2] : vector<4x8x8xf32> to vector<4x8xf32>
    %35 = vector.shape_cast %34 : vector<4x8xf32> to vector<4x8x1xf32>
    %36 = tpu.reciprocal %35 {approx = true} : vector<4x8x1xf32> -> vector<4x8x1xf32>
    %37 = vector.broadcast %36 : vector<4x8x1xf32> to vector<4x8x8xf32>
    %38 = arith.mulf %33, %37 : vector<4x8x8xf32>
    %39 = arith.truncf %38 : vector<4x8x8xf32> to vector<4x8x8xbf16>
    %40 = arith.truncf %17 : vector<4x8x8xf32> to vector<4x8x8xbf16>
    "tpu.trace_start"() <{level = 10 : i32, message = "hqk,hke->hqe"}> : () -> ()
    %cst_14 = arith.constant dense<0.000000e+00> : vector<4x8x8xf32>
    %41 = tpu.matmul %39, %40, %cst_14 {dimension_numbers = #tpu.dot_dimension_numbers<[2], [1], [1], [2], [0, 0, 0, 1, 1, 2], [0], [0]>} : vector<4x8x8xbf16>, vector<4x8x8xbf16>, vector<4x8x8xf32> -> vector<4x8x8xf32>
    "tpu.trace_stop"() : () -> ()
    %42 = arith.truncf %41 : vector<4x8x8xf32> to vector<4x8x8xbf16>
    %c0_15 = arith.constant 0 : index
    %c0_16 = arith.constant 0 : index
    %c0_17 = arith.constant 0 : index
    %c0_18 = arith.constant 0 : index
    %43 = vector.load %arg6[%c0_15, %c0_16, %c0_17, %c0_18] : memref<1x4x8x32xbf16, #tpu.memory_space<vmem>>, vector<1x4x8x32xbf16>
    %44 = vector.shape_cast %43 : vector<1x4x8x32xbf16> to vector<4x8x32xbf16>
    "tpu.trace_start"() <{level = 10 : i32, message = "hqe,hed->hqd"}> : () -> ()
    %cst_19 = arith.constant dense<0.000000e+00> : vector<4x8x32xf32>
    %45 = tpu.matmul %42, %44, %cst_19 {dimension_numbers = #tpu.dot_dimension_numbers<[2], [1], [1], [2], [0, 0, 0, 1, 1, 2], [0], [0]>} : vector<4x8x8xbf16>, vector<4x8x32xbf16>, vector<4x8x32xf32> -> vector<4x8x32xf32>
    "tpu.trace_stop"() : () -> ()
    %cst_20 = arith.constant dense<0.000000e+00> : vector<8x32xf32>
    %46 = vector.multi_reduction <add>, %45, %cst_20 [0] : vector<4x8x32xf32> to vector<8x32xf32>
    %c0_21 = arith.constant 0 : index
    %c0_22 = arith.constant 0 : index
    %c0_23 = arith.constant 0 : index
    %47 = vector.load %arg7[%c0_21, %c0_22, %c0_23] : memref<1x1x32xf32, #tpu.memory_space<vmem>>, vector<1x1x32xf32>
    %48 = vector.shape_cast %47 : vector<1x1x32xf32> to vector<1x32xf32>
    %49 = vector.broadcast %48 : vector<1x32xf32> to vector<8x32xf32>
    %50 = arith.addf %46, %49 : vector<8x32xf32>
    %51 = arith.addf %3, %50 : vector<8x32xf32>
    %cst_24 = arith.constant dense<0.000000e+00> : vector<8xf32>
    %52 = vector.multi_reduction <add>, %51, %cst_24 [1] : vector<8x32xf32> to vector<8xf32>
    %53 = vector.shape_cast %52 : vector<8xf32> to vector<8x1xf32>
    %cst_25 = arith.constant 3.200000e+01 : f32
    %54 = vector.broadcast %cst_25 : f32 to vector<8x1xf32>
    %55 = arith.divf %53, %54 : vector<8x1xf32>
    %56 = vector.broadcast %55 : vector<8x1xf32> to vector<8x32xf32>
    %57 = arith.subf %51, %56 : vector<8x32xf32>
    %58 = vector.broadcast %55 : vector<8x1xf32> to vector<8x32xf32>
    %59 = arith.subf %51, %58 : vector<8x32xf32>
    %60 = arith.mulf %57, %59 : vector<8x32xf32>
    %cst_26 = arith.constant dense<0.000000e+00> : vector<8xf32>
    %61 = vector.multi_reduction <add>, %60, %cst_26 [1] : vector<8x32xf32> to vector<8xf32>
    %62 = vector.shape_cast %61 : vector<8xf32> to vector<8x1xf32>
    %cst_27 = arith.constant 3.200000e+01 : f32
    %63 = vector.broadcast %cst_27 : f32 to vector<8x1xf32>
    %64 = arith.divf %62, %63 : vector<8x1xf32>
    %65 = vector.broadcast %55 : vector<8x1xf32> to vector<8x32xf32>
    %66 = arith.subf %51, %65 : vector<8x32xf32>
    %cst_28 = arith.constant 9.99999974E-6 : f32
    %67 = vector.broadcast %cst_28 : f32 to vector<8x1xf32>
    %68 = arith.addf %64, %67 : vector<8x1xf32>
    %69 = math.rsqrt %68 : vector<8x1xf32>
    %70 = vector.broadcast %69 : vector<8x1xf32> to vector<8x32xf32>
    %71 = arith.mulf %66, %70 : vector<8x32xf32>
    %c0_29 = arith.constant 0 : index
    %c0_30 = arith.constant 0 : index
    %c0_31 = arith.constant 0 : index
    %72 = vector.load %arg8[%c0_29, %c0_30, %c0_31] : memref<1x1x32xf32, #tpu.memory_space<vmem>>, vector<1x1x32xf32>
    %73 = vector.shape_cast %72 : vector<1x1x32xf32> to vector<1x32xf32>
    %74 = vector.broadcast %73 : vector<1x32xf32> to vector<8x32xf32>
    %75 = arith.mulf %71, %74 : vector<8x32xf32>
    %c0_32 = arith.constant 0 : index
    %c0_33 = arith.constant 0 : index
    %c0_34 = arith.constant 0 : index
    %76 = vector.load %arg9[%c0_32, %c0_33, %c0_34] : memref<1x1x32xf32, #tpu.memory_space<vmem>>, vector<1x1x32xf32>
    %77 = vector.shape_cast %76 : vector<1x1x32xf32> to vector<1x32xf32>
    %78 = vector.broadcast %77 : vector<1x32xf32> to vector<8x32xf32>
    %79 = arith.addf %75, %78 : vector<8x32xf32>
    %80 = arith.truncf %79 : vector<8x32xf32> to vector<8x32xbf16>
    %c0_35 = arith.constant 0 : index
    %c0_36 = arith.constant 0 : index
    %c0_37 = arith.constant 0 : index
    %81 = vector.load %arg10[%c0_35, %c0_36, %c0_37] : memref<1x32x64xbf16, #tpu.memory_space<vmem>>, vector<1x32x64xbf16>
    %82 = vector.shape_cast %81 : vector<1x32x64xbf16> to vector<32x64xbf16>
    %cst_38 = arith.constant dense<0.000000e+00> : vector<8x64xf32>
    %83 = tpu.matmul %80, %82, %cst_38 {dimension_numbers = #tpu.dot_dimension_numbers<[1], [0], [0], [1], [0, 0, 1, 1], [], []>} : vector<8x32xbf16>, vector<32x64xbf16>, vector<8x64xf32> -> vector<8x64xf32>
    %c0_39 = arith.constant 0 : index
    %c0_40 = arith.constant 0 : index
    %c0_41 = arith.constant 0 : index
    %84 = vector.load %arg11[%c0_39, %c0_40, %c0_41] : memref<1x1x64xf32, #tpu.memory_space<vmem>>, vector<1x1x64xf32>
    %85 = vector.shape_cast %84 : vector<1x1x64xf32> to vector<1x64xf32>
    %86 = vector.broadcast %85 : vector<1x64xf32> to vector<8x64xf32>
    %87 = arith.addf %83, %86 : vector<8x64xf32>
    %cst_42 = arith.constant 0.000000e+00 : f32
    %88 = vector.broadcast %cst_42 : f32 to vector<8x64xf32>
    %89 = arith.maximumf %87, %88 : vector<8x64xf32>
    %90 = arith.truncf %89 : vector<8x64xf32> to vector<8x64xbf16>
    %c0_43 = arith.constant 0 : index
    %c0_44 = arith.constant 0 : index
    %c0_45 = arith.constant 0 : index
    %91 = vector.load %arg12[%c0_43, %c0_44, %c0_45] : memref<1x64x32xbf16, #tpu.memory_space<vmem>>, vector<1x64x32xbf16>
    %92 = vector.shape_cast %91 : vector<1x64x32xbf16> to vector<64x32xbf16>
    %cst_46 = arith.constant dense<0.000000e+00> : vector<8x32xf32>
    %93 = tpu.matmul %90, %92, %cst_46 {dimension_numbers = #tpu.dot_dimension_numbers<[1], [0], [0], [1], [0, 0, 1, 1], [], []>} : vector<8x64xbf16>, vector<64x32xbf16>, vector<8x32xf32> -> vector<8x32xf32>
    %c0_47 = arith.constant 0 : index
    %c0_48 = arith.constant 0 : index
    %c0_49 = arith.constant 0 : index
    %94 = vector.load %arg13[%c0_47, %c0_48, %c0_49] : memref<1x1x32xf32, #tpu.memory_space<vmem>>, vector<1x1x32xf32>
    %95 = vector.shape_cast %94 : vector<1x1x32xf32> to vector<1x32xf32>
    %96 = vector.broadcast %95 : vector<1x32xf32> to vector<8x32xf32>
    %97 = arith.addf %93, %96 : vector<8x32xf32>
    %98 = arith.addf %79, %97 : vector<8x32xf32>
    %cst_50 = arith.constant dense<0.000000e+00> : vector<8xf32>
    %99 = vector.multi_reduction <add>, %98, %cst_50 [1] : vector<8x32xf32> to vector<8xf32>
    %100 = vector.shape_cast %99 : vector<8xf32> to vector<8x1xf32>
    %cst_51 = arith.constant 3.200000e+01 : f32
    %101 = vector.broadcast %cst_51 : f32 to vector<8x1xf32>
    %102 = arith.divf %100, %101 : vector<8x1xf32>
    %103 = vector.broadcast %102 : vector<8x1xf32> to vector<8x32xf32>
    %104 = arith.subf %98, %103 : vector<8x32xf32>
    %105 = vector.broadcast %102 : vector<8x1xf32> to vector<8x32xf32>
    %106 = arith.subf %98, %105 : vector<8x32xf32>
    %107 = arith.mulf %104, %106 : vector<8x32xf32>
    %cst_52 = arith.constant dense<0.000000e+00> : vector<8xf32>
    %108 = vector.multi_reduction <add>, %107, %cst_52 [1] : vector<8x32xf32> to vector<8xf32>
    %109 = vector.shape_cast %108 : vector<8xf32> to vector<8x1xf32>
    %cst_53 = arith.constant 3.200000e+01 : f32
    %110 = vector.broadcast %cst_53 : f32 to vector<8x1xf32>
    %111 = arith.divf %109, %110 : vector<8x1xf32>
    %112 = vector.broadcast %102 : vector<8x1xf32> to vector<8x32xf32>
    %113 = arith.subf %98, %112 : vector<8x32xf32>
    %cst_54 = arith.constant 9.99999974E-6 : f32
    %114 = vector.broadcast %cst_54 : f32 to vector<8x1xf32>
    %115 = arith.addf %111, %114 : vector<8x1xf32>
    %116 = math.rsqrt %115 : vector<8x1xf32>
    %117 = vector.broadcast %116 : vector<8x1xf32> to vector<8x32xf32>
    %118 = arith.mulf %113, %117 : vector<8x32xf32>
    %c0_55 = arith.constant 0 : index
    %c0_56 = arith.constant 0 : index
    %c0_57 = arith.constant 0 : index
    %119 = vector.load %arg14[%c0_55, %c0_56, %c0_57] : memref<1x1x32xf32, #tpu.memory_space<vmem>>, vector<1x1x32xf32>
    %120 = vector.shape_cast %119 : vector<1x1x32xf32> to vector<1x32xf32>
    %121 = vector.broadcast %120 : vector<1x32xf32> to vector<8x32xf32>
    %122 = arith.mulf %118, %121 : vector<8x32xf32>
    %c0_58 = arith.constant 0 : index
    %c0_59 = arith.constant 0 : index
    %c0_60 = arith.constant 0 : index
    %123 = vector.load %arg15[%c0_58, %c0_59, %c0_60] : memref<1x1x32xf32, #tpu.memory_space<vmem>>, vector<1x1x32xf32>
    %124 = vector.shape_cast %123 : vector<1x1x32xf32> to vector<1x32xf32>
    %125 = vector.broadcast %124 : vector<1x32xf32> to vector<8x32xf32>
    %126 = arith.addf %122, %125 : vector<8x32xf32>
    %c0_61 = arith.constant 0 : index
    %c0_62 = arith.constant 0 : index
    %127 = vector.load %arg19[%c0_61, %c0_62] : memref<8x32xf32, #tpu.memory_space<vmem>>, vector<8x32xf32>
    tpu.vector_store %arg19[%c0_61, %c0_62], %126 {strides = array<i32>} : memref<8x32xf32, #tpu.memory_space<vmem>>, vector<8x32xf32>,
    %c1_i32 = arith.constant 1 : i32
    %128 = arith.cmpi eq, %arg1, %c1_i32 : i32
    %129 = arith.extui %128 : i1 to i32
    %c0_i32_63 = arith.constant 0 : i32
    %130 = arith.cmpi ne, %129, %c0_i32_63 : i32
    scf.if %130 {
      %131 = arith.truncf %126 : vector<8x32xf32> to vector<8x32xbf16>
      %c0_64 = arith.constant 0 : index
      %c0_65 = arith.constant 0 : index
      %132 = vector.load %arg16[%c0_64, %c0_65] : memref<32x32xbf16, #tpu.memory_space<vmem>>, vector<32x32xbf16>
      %cst_66 = arith.constant dense<0.000000e+00> : vector<8x32xf32>
      %133 = tpu.matmul %131, %132, %cst_66 {dimension_numbers = #tpu.dot_dimension_numbers<[1], [0], [0], [1], [0, 0, 1, 1], [], []>} : vector<8x32xbf16>, vector<32x32xbf16>, vector<8x32xf32> -> vector<8x32xf32>
      %c0_67 = arith.constant 0 : index
      %c0_68 = arith.constant 0 : index
      %134 = vector.load %arg17[%c0_67, %c0_68] : memref<1x32xf32, #tpu.memory_space<vmem>>, vector<1x32xf32>
      %135 = vector.broadcast %134 : vector<1x32xf32> to vector<8x32xf32>
      %136 = arith.addf %133, %135 : vector<8x32xf32>
      %c0_69 = arith.constant 0 : index
      %c0_70 = arith.constant 0 : index
      %c0_71 = arith.constant 0 : index
      %137 = vector.load %arg18[%c0_69, %c0_70, %c0_71] : memref<1x8x32xf32, #tpu.memory_space<vmem>>, vector<1x8x32xf32>
      %138 = vector.shape_cast %137 : vector<1x8x32xf32> to vector<8x32xf32>
      %139 = vector.shape_cast %136 : vector<8x32xf32> to vector<1x8x32xf32>
      tpu.vector_store %arg18[%c0_69, %c0_70, %c0_71], %139 {strides = array<i32>} : memref<1x8x32xf32, #tpu.memory_space<vmem>>, vector<1x8x32xf32>,
    } else {
    }
    return
  }
  func.func @transform_0(%arg0: i32, %arg1: i32) -> (i32, i32, i32) {
    %c0_i32 = arith.constant 0 : i32
    %c0_i32_0 = arith.constant 0 : i32
    %c0_i32_1 = arith.constant 0 : i32
    return %arg0, %c0_i32, %c0_i32_0 : i32, i32, i32
  }
  func.func @transform_1(%arg0: i32, %arg1: i32) -> (i32, i32) {
    %c0_i32 = arith.constant 0 : i32
    %c0_i32_0 = arith.constant 0 : i32
    %c0_i32_1 = arith.constant 0 : i32
    return %c0_i32, %c0_i32_0 : i32, i32
  }
  func.func @transform_2(%arg0: i32, %arg1: i32) -> (i32, i32, i32, i32) {
    %c0_i32 = arith.constant 0 : i32
    %c0_i32_0 = arith.constant 0 : i32
    %c0_i32_1 = arith.constant 0 : i32
    %c0_i32_2 = arith.constant 0 : i32
    return %arg1, %c0_i32, %c0_i32_0, %c0_i32_1 : i32, i32, i32, i32
  }
  func.func @transform_3(%arg0: i32, %arg1: i32) -> (i32, i32, i32, i32) {
    %c0_i32 = arith.constant 0 : i32
    %c0_i32_0 = arith.constant 0 : i32
    %c0_i32_1 = arith.constant 0 : i32
    %c0_i32_2 = arith.constant 0 : i32
    return %arg1, %c0_i32, %c0_i32_0, %c0_i32_1 : i32, i32, i32, i32
  }
  func.func @transform_4(%arg0: i32, %arg1: i32) -> (i32, i32, i32, i32) {
    %c0_i32 = arith.constant 0 : i32
    %c0_i32_0 = arith.constant 0 : i32
    %c0_i32_1 = arith.constant 0 : i32
    %c0_i32_2 = arith.constant 0 : i32
    return %arg1, %c0_i32, %c0_i32_0, %c0_i32_1 : i32, i32, i32, i32
  }
  func.func @transform_5(%arg0: i32, %arg1: i32) -> (i32, i32, i32) {
    %c0_i32 = arith.constant 0 : i32
    %c0_i32_0 = arith.constant 0 : i32
    %c0_i32_1 = arith.constant 0 : i32
    return %arg1, %c0_i32, %c0_i32_0 : i32, i32, i32
  }
  func.func @transform_6(%arg0: i32, %arg1: i32) -> (i32, i32, i32) {
    %c0_i32 = arith.constant 0 : i32
    %c0_i32_0 = arith.constant 0 : i32
    %c0_i32_1 = arith.constant 0 : i32
    return %arg1, %c0_i32, %c0_i32_0 : i32, i32, i32
  }
  func.func @transform_7(%arg0: i32, %arg1: i32) -> (i32, i32, i32) {
    %c0_i32 = arith.constant 0 : i32
    %c0_i32_0 = arith.constant 0 : i32
    %c0_i32_1 = arith.constant 0 : i32
    return %arg1, %c0_i32, %c0_i32_0 : i32, i32, i32
  }
  func.func @transform_8(%arg0: i32, %arg1: i32) -> (i32, i32, i32) {
    %c0_i32 = arith.constant 0 : i32
    %c0_i32_0 = arith.constant 0 : i32
    %c0_i32_1 = arith.constant 0 : i32
    return %arg1, %c0_i32, %c0_i32_0 : i32, i32, i32
  }
  func.func @transform_9(%arg0: i32, %arg1: i32) -> (i32, i32, i32) {
    %c0_i32 = arith.constant 0 : i32
    %c0_i32_0 = arith.constant 0 : i32
    %c0_i32_1 = arith.constant 0 : i32
    return %arg1, %c0_i32, %c0_i32_0 : i32, i32, i32
  }
  func.func @transform_10(%arg0: i32, %arg1: i32) -> (i32, i32, i32) {
    %c0_i32 = arith.constant 0 : i32
    %c0_i32_0 = arith.constant 0 : i32
    %c0_i32_1 = arith.constant 0 : i32
    return %arg1, %c0_i32, %c0_i32_0 : i32, i32, i32
  }
  func.func @transform_11(%arg0: i32, %arg1: i32) -> (i32, i32, i32) {
    %c0_i32 = arith.constant 0 : i32
    %c0_i32_0 = arith.constant 0 : i32
    %c0_i32_1 = arith.constant 0 : i32
    return %arg1, %c0_i32, %c0_i32_0 : i32, i32, i32
  }
  func.func @transform_12(%arg0: i32, %arg1: i32) -> (i32, i32, i32) {
    %c0_i32 = arith.constant 0 : i32
    %c0_i32_0 = arith.constant 0 : i32
    %c0_i32_1 = arith.constant 0 : i32
    return %arg1, %c0_i32, %c0_i32_0 : i32, i32, i32
  }
  func.func @transform_13(%arg0: i32, %arg1: i32) -> (i32, i32, i32) {
    %c0_i32 = arith.constant 0 : i32
    %c0_i32_0 = arith.constant 0 : i32
    %c0_i32_1 = arith.constant 0 : i32
    return %arg1, %c0_i32, %c0_i32_0 : i32, i32, i32
  }
  func.func @transform_14(%arg0: i32, %arg1: i32) -> (i32, i32) {
    %c0_i32 = arith.constant 0 : i32
    %c0_i32_0 = arith.constant 0 : i32
    %c0_i32_1 = arith.constant 0 : i32
    return %c0_i32, %c0_i32_0 : i32, i32
  }
  func.func @transform_15(%arg0: i32, %arg1: i32) -> (i32, i32) {
    %c0_i32 = arith.constant 0 : i32
    %c0_i32_0 = arith.constant 0 : i32
    %c0_i32_1 = arith.constant 0 : i32
    return %c0_i32, %c0_i32_0 : i32, i32
  }
  func.func @transform_16(%arg0: i32, %arg1: i32) -> (i32, i32, i32) {
    %c0_i32 = arith.constant 0 : i32
    %c0_i32_0 = arith.constant 0 : i32
    %c0_i32_1 = arith.constant 0 : i32
    return %arg0, %c0_i32, %c0_i32_0 : i32, i32, i32
  }
}

</mosaic_0001>

<llo_original>
// kernel: one_tower_lcm_forward.1
$region0: #{one_tower_lcm_forward.1}
  #allocation0 [shape = 'u32[]', space=smem, size = 0x4, offset = 0x4, fixed_abs, tag = 'smem constant byte address 0x4 - core index']
  #allocation1 [shape = 'u32[144,128]{1,0:T(1,128)}', space=vmem, size = 0x12000, scoped, tag = 'internal scratch']
  #allocation2 [shape = 'f32[8,32]{1,0:T(8,128)}', space=vmem, size = 0x1000, scoped, tag = 'scratch operand']
  %s0 = inlined_call_operand.vmem [shape: f32[2,8,32], index: 0, kind: input, shape index: {}]
  %s1 = inlined_call_operand.vmem [shape: f32[8,32], index: 1, kind: input, shape index: {}]
  %s2 = inlined_call_operand.vmem [shape: bf16[2,12,32,8], index: 2, kind: input, shape index: {}]
  %s3 = inlined_call_operand.vmem [shape: f32[2,12,1,8], index: 3, kind: input, shape index: {}]
  %s4 = inlined_call_operand.vmem [shape: bf16[2,4,8,32], index: 4, kind: input, shape index: {}]
  %s5 = inlined_call_operand.vmem [shape: f32[2,1,32], index: 5, kind: input, shape index: {}]
  %s6 = inlined_call_operand.vmem [shape: f32[2,1,32], index: 6, kind: input, shape index: {}]
  %s7 = inlined_call_operand.vmem [shape: f32[2,1,32], index: 7, kind: input, shape index: {}]
  %s8 = inlined_call_operand.vmem [shape: bf16[2,32,64], index: 8, kind: input, shape index: {}]
  %s9 = inlined_call_operand.vmem [shape: f32[2,1,64], index: 9, kind: input, shape index: {}]
  %s10 = inlined_call_operand.vmem [shape: bf16[2,64,32], index: 10, kind: input, shape index: {}]
  %s11 = inlined_call_operand.vmem [shape: f32[2,1,32], index: 11, kind: input, shape index: {}]
  %s12 = inlined_call_operand.vmem [shape: f32[2,1,32], index: 12, kind: input, shape index: {}]
  %s13 = inlined_call_operand.vmem [shape: f32[2,1,32], index: 13, kind: input, shape index: {}]
  %s14 = inlined_call_operand.vmem [shape: bf16[32,32], index: 14, kind: input, shape index: {}]
  %s15 = inlined_call_operand.vmem [shape: f32[1,32], index: 15, kind: input, shape index: {}]
  %s16 = inlined_call_operand.hbm [shape: f32[2,8,32], index: 16, kind: output, shape index: {}]
  %s17 = sld [smem:[#allocation0]]
  $region105: #{one_tower_lcm_forward.1} parent=0
    _
  %s19 = ssub.s32 1, %s17
  %s20 = scalar_select 0, %s19, %s17
  $region1: #{one_tower_lcm_forward.1} parent=0
    #allocation3 [shape = 'u8[8192]{0}', space=vmem, size = 0x2000, scoped, tag = 'output window, operand 0']
    #allocation4 [shape = 's32[2]{0}', space=sflag, size = 0x8, scoped, tag = 'scoped memory for one_tower_lcm_forward.1']
    %21 = vsyncpa [#allocation4], 0
    %s22 = scalar_lea.sflag [#allocation4], 1
    %23 = vsyncpa %s22, 0
    loop: start=0, step=1, limit=6
    $region2: #{one_tower_lcm_forward.1} parent=1 // loop_pre_header
      _
    $region3: #{one_tower_lcm_forward.1} parent=1 // loop_header
      %s25 = sphi 0, %s29
      %p26 = scmp.ge.s32.totalorder %s25, 6
      %s32 = sphi 0, %s44
      %s33 = sphi 0, %s40
      %s34 = sphi 0, %s32
      %s35 = sphi 0, %s33
      %s36 = sphi 0, %s34
      %s37 = sphi 0, %s35
      %s47 = sphi 0, %s49
      %s50 = sphi 0, %s47
      %s51 = sphi 0, %s50
      %s67 = sphi 0, %s51
      %s71 = sphi 0, %s71
      %s73 = sphi 0, %s71
      %s74 = sphi 0, %s73
      %s88 = sphi 0, %s74
      %s94 = sphi 0, %s96
      %s97 = sphi 0, %s94
      %s98 = sphi 0, %s97
      %s114 = sphi 0, %s98
      %s120 = sphi 0, %s122
      %s123 = sphi 0, %s120
      %s124 = sphi 0, %s123
      %s140 = sphi 0, %s124
      %s146 = sphi 0, %s148
      %s149 = sphi 0, %s146
      %s150 = sphi 0, %s149
      %s166 = sphi 0, %s150
      %s172 = sphi 0, %s174
      %s175 = sphi 0, %s172
      %s176 = sphi 0, %s175
      %s192 = sphi 0, %s176
      %s198 = sphi 0, %s200
      %s201 = sphi 0, %s198
      %s202 = sphi 0, %s201
      %s218 = sphi 0, %s202
      %s224 = sphi 0, %s226
      %s227 = sphi 0, %s224
      %s228 = sphi 0, %s227
      %s244 = sphi 0, %s228
      %s250 = sphi 0, %s252
      %s253 = sphi 0, %s250
      %s254 = sphi 0, %s253
      %s270 = sphi 0, %s254
      %s276 = sphi 0, %s278
      %s279 = sphi 0, %s276
      %s280 = sphi 0, %s279
      %s296 = sphi 0, %s280
      %s302 = sphi 0, %s304
      %s305 = sphi 0, %s302
      %s306 = sphi 0, %s305
      %s322 = sphi 0, %s306
      %s328 = sphi 0, %s330
      %s331 = sphi 0, %s328
      %s332 = sphi 0, %s331
      %s348 = sphi 0, %s332
      %s354 = sphi 0, %s356
      %s357 = sphi 0, %s354
      %s358 = sphi 0, %s357
      %s374 = sphi 0, %s358
      %s380 = sphi 0, %s382
      %s383 = sphi 0, %s380
      %s384 = sphi 0, %s383
      %s400 = sphi 0, %s384
      %s404 = sphi 0, %s404
      %s406 = sphi 0, %s404
      %s407 = sphi 0, %s406
      %s421 = sphi 0, %s407
      %s425 = sphi 0, %s425
      %s427 = sphi 0, %s425
      %s428 = sphi 0, %s427
      %s442 = sphi 0, %s428
      %s448 = sphi 0, %s450
      %s451 = sphi 0, %s448
      %s452 = sphi 0, %s451
      %s468 = sphi 0, %s452
    $region4: #{one_tower_lcm_forward.1} parent=1 // loop_header_branch
      %28 = sbr.rel (%p26) target = $region8
    $region5: #{one_tower_lcm_forward.1} parent=1 // loop_body
      %s30 = ssub.s32 %s25, 1
      %s31 = ssub.s32 %s25, 2
      %s38 = sadd.s32 1, %s33
      %p39 = scmp.ge.s32.totalorder %s38, 2
      %s40 = scalar_select %p39, 0, %s38
      %s41 = sadd.s32 1, %s32
      %s42 = scalar_select %p39, %s41, %s32
      %p43 = scmp.ge.s32.totalorder %s42, 2
      %s44 = scalar_select %p43, 0, %s42
      %s45 = ssub.s32 %s32, %s44
      %p46 = scmp.eq.s32.totalorder %s45, 0
      %s48 = sadd.s32 %s47, 1
      %s49 = scalar_select %p46, %s47, %s48
      %p52 = pneg %p46
      %p53 = scmp.eq.s32.totalorder %s25, 3
      %p54 = por %p52, %p53
      %p55 = scmp.ne.s32.totalorder %s47, %s50
      %p56 = scmp.eq.s32.totalorder %s25, 0
      %p57 = por %p55, %p56
      %p58 = scmp.ne.s32.totalorder %s47, %s50
      %p59 = scmp.eq.s32.totalorder %s30, 3
      %p60 = por %p58, %p59
      %p61 = scmp.ne.s32.totalorder %s50, %s51
      %p62 = scmp.eq.s32.totalorder %s30, 0
      %p63 = por %p61, %p62
      %p64 = scmp.ne.s32.totalorder %s50, %s51
      %p65 = scmp.eq.s32.totalorder %s31, 3
      %p66 = por %p64, %p65
      %p68 = scmp.ne.s32.totalorder %s51, %s67
      %p69 = scmp.eq.s32.totalorder %s31, 0
      %p70 = por %p68, %p69
      %s72 = sadd.s32 %s71, 1
      %p75 = scmp.eq.s32.totalorder %s25, 3
      %p76 = scmp.ne.s32.totalorder %s71, %s73
      %p77 = scmp.eq.s32.totalorder %s25, 0
      %p78 = por %p76, %p77
      %p79 = scmp.ne.s32.totalorder %s71, %s73
      %p80 = scmp.eq.s32.totalorder %s30, 3
      %p81 = por %p79, %p80
      %p82 = scmp.ne.s32.totalorder %s73, %s74
      %p83 = scmp.eq.s32.totalorder %s30, 0
      %p84 = por %p82, %p83
      %p85 = scmp.ne.s32.totalorder %s73, %s74
      %p86 = scmp.eq.s32.totalorder %s31, 3
      %p87 = por %p85, %p86
      %p89 = scmp.ne.s32.totalorder %s74, %s88
      %p90 = scmp.eq.s32.totalorder %s31, 0
      %p91 = por %p89, %p90
      %s92 = ssub.s32 %s33, %s40
      %p93 = scmp.eq.s32.totalorder %s92, 0
      %s95 = sadd.s32 %s94, 1
      %s96 = scalar_select %p93, %s94, %s95
      %p99 = pneg %p93
      %p100 = scmp.eq.s32.totalorder %s25, 3
      %p101 = por %p99, %p100
      %p102 = scmp.ne.s32.totalorder %s94, %s97
      %p103 = scmp.eq.s32.totalorder %s25, 0
      %p104 = por %p102, %p103
      %p105 = scmp.ne.s32.totalorder %s94, %s97
      %p106 = scmp.eq.s32.totalorder %s30, 3
      %p107 = por %p105, %p106
      %p108 = scmp.ne.s32.totalorder %s97, %s98
      %p109 = scmp.eq.s32.totalorder %s30, 0
      %p110 = por %p108, %p109
      %p111 = scmp.ne.s32.totalorder %s97, %s98
      %p112 = scmp.eq.s32.totalorder %s31, 3
      %p113 = por %p111, %p112
      %p115 = scmp.ne.s32.totalorder %s98, %s114
      %p116 = scmp.eq.s32.totalorder %s31, 0
      %p117 = por %p115, %p116
      %s118 = ssub.s32 %s33, %s40
      %p119 = scmp.eq.s32.totalorder %s118, 0
      %s121 = sadd.s32 %s120, 1
      %s122 = scalar_select %p119, %s120, %s121
      %p125 = pneg %p119
      %p126 = scmp.eq.s32.totalorder %s25, 3
      %p127 = por %p125, %p126
      %p128 = scmp.ne.s32.totalorder %s120, %s123
      %p129 = scmp.eq.s32.totalorder %s25, 0
      %p130 = por %p128, %p129
      %p131 = scmp.ne.s32.totalorder %s120, %s123
      %p132 = scmp.eq.s32.totalorder %s30, 3
      %p133 = por %p131, %p132
      %p134 = scmp.ne.s32.totalorder %s123, %s124
      %p135 = scmp.eq.s32.totalorder %s30, 0
      %p136 = por %p134, %p135
      %p137 = scmp.ne.s32.totalorder %s123, %s124
      %p138 = scmp.eq.s32.totalorder %s31, 3
      %p139 = por %p137, %p138
      %p141 = scmp.ne.s32.totalorder %s124, %s140
      %p142 = scmp.eq.s32.totalorder %s31, 0
      %p143 = por %p141, %p142
      %s144 = ssub.s32 %s33, %s40
      %p145 = scmp.eq.s32.totalorder %s144, 0
      %s147 = sadd.s32 %s146, 1
      %s148 = scalar_select %p145, %s146, %s147
      %p151 = pneg %p145
      %p152 = scmp.eq.s32.totalorder %s25, 3
      %p153 = por %p151, %p152
      %p154 = scmp.ne.s32.totalorder %s146, %s149
      %p155 = scmp.eq.s32.totalorder %s25, 0
      %p156 = por %p154, %p155
      %p157 = scmp.ne.s32.totalorder %s146, %s149
      %p158 = scmp.eq.s32.totalorder %s30, 3
      %p159 = por %p157, %p158
      %p160 = scmp.ne.s32.totalorder %s149, %s150
      %p161 = scmp.eq.s32.totalorder %s30, 0
      %p162 = por %p160, %p161
      %p163 = scmp.ne.s32.totalorder %s149, %s150
      %p164 = scmp.eq.s32.totalorder %s31, 3
      %p165 = por %p163, %p164
      %p167 = scmp.ne.s32.totalorder %s150, %s166
      %p168 = scmp.eq.s32.totalorder %s31, 0
      %p169 = por %p167, %p168
      %s170 = ssub.s32 %s33, %s40
      %p171 = scmp.eq.s32.totalorder %s170, 0
      %s173 = sadd.s32 %s172, 1
      %s174 = scalar_select %p171, %s172, %s173
      %p177 = pneg %p171
      %p178 = scmp.eq.s32.totalorder %s25, 3
      %p179 = por %p177, %p178
      %p180 = scmp.ne.s32.totalorder %s172, %s175
      %p181 = scmp.eq.s32.totalorder %s25, 0
      %p182 = por %p180, %p181
      %p183 = scmp.ne.s32.totalorder %s172, %s175
      %p184 = scmp.eq.s32.totalorder %s30, 3
      %p185 = por %p183, %p184
      %p186 = scmp.ne.s32.totalorder %s175, %s176
      %p187 = scmp.eq.s32.totalorder %s30, 0
      %p188 = por %p186, %p187
      %p189 = scmp.ne.s32.totalorder %s175, %s176
      %p190 = scmp.eq.s32.totalorder %s31, 3
      %p191 = por %p189, %p190
      %p193 = scmp.ne.s32.totalorder %s176, %s192
      %p194 = scmp.eq.s32.totalorder %s31, 0
      %p195 = por %p193, %p194
      %s196 = ssub.s32 %s33, %s40
      %p197 = scmp.eq.s32.totalorder %s196, 0
      %s199 = sadd.s32 %s198, 1
      %s200 = scalar_select %p197, %s198, %s199
      %p203 = pneg %p197
      %p204 = scmp.eq.s32.totalorder %s25, 3
      %p205 = por %p203, %p204
      %p206 = scmp.ne.s32.totalorder %s198, %s201
      %p207 = scmp.eq.s32.totalorder %s25, 0
      %p208 = por %p206, %p207
      %p209 = scmp.ne.s32.totalorder %s198, %s201
      %p210 = scmp.eq.s32.totalorder %s30, 3
      %p211 = por %p209, %p210
      %p212 = scmp.ne.s32.totalorder %s201, %s202
      %p213 = scmp.eq.s32.totalorder %s30, 0
      %p214 = por %p212, %p213
      %p215 = scmp.ne.s32.totalorder %s201, %s202
      %p216 = scmp.eq.s32.totalorder %s31, 3
      %p217 = por %p215, %p216
      %p219 = scmp.ne.s32.totalorder %s202, %s218
      %p220 = scmp.eq.s32.totalorder %s31, 0
      %p221 = por %p219, %p220
      %s222 = ssub.s32 %s33, %s40
      %p223 = scmp.eq.s32.totalorder %s222, 0
      %s225 = sadd.s32 %s224, 1
      %s226 = scalar_select %p223, %s224, %s225
      %p229 = pneg %p223
      %p230 = scmp.eq.s32.totalorder %s25, 3
      %p231 = por %p229, %p230
      %p232 = scmp.ne.s32.totalorder %s224, %s227
      %p233 = scmp.eq.s32.totalorder %s25, 0
      %p234 = por %p232, %p233
      %p235 = scmp.ne.s32.totalorder %s224, %s227
      %p236 = scmp.eq.s32.totalorder %s30, 3
      %p237 = por %p235, %p236
      %p238 = scmp.ne.s32.totalorder %s227, %s228
      %p239 = scmp.eq.s32.totalorder %s30, 0
      %p240 = por %p238, %p239
      %p241 = scmp.ne.s32.totalorder %s227, %s228
      %p242 = scmp.eq.s32.totalorder %s31, 3
      %p243 = por %p241, %p242
      %p245 = scmp.ne.s32.totalorder %s228, %s244
      %p246 = scmp.eq.s32.totalorder %s31, 0
      %p247 = por %p245, %p246
      %s248 = ssub.s32 %s33, %s40
      %p249 = scmp.eq.s32.totalorder %s248, 0
      %s251 = sadd.s32 %s250, 1
      %s252 = scalar_select %p249, %s250, %s251
      %p255 = pneg %p249
      %p256 = scmp.eq.s32.totalorder %s25, 3
      %p257 = por %p255, %p256
      %p258 = scmp.ne.s32.totalorder %s250, %s253
      %p259 = scmp.eq.s32.totalorder %s25, 0
      %p260 = por %p258, %p259
      %p261 = scmp.ne.s32.totalorder %s250, %s253
      %p262 = scmp.eq.s32.totalorder %s30, 3
      %p263 = por %p261, %p262
      %p264 = scmp.ne.s32.totalorder %s253, %s254
      %p265 = scmp.eq.s32.totalorder %s30, 0
      %p266 = por %p264, %p265
      %p267 = scmp.ne.s32.totalorder %s253, %s254
      %p268 = scmp.eq.s32.totalorder %s31, 3
      %p269 = por %p267, %p268
      %p271 = scmp.ne.s32.totalorder %s254, %s270
      %p272 = scmp.eq.s32.totalorder %s31, 0
      %p273 = por %p271, %p272
      %s274 = ssub.s32 %s33, %s40
      %p275 = scmp.eq.s32.totalorder %s274, 0
      %s277 = sadd.s32 %s276, 1
      %s278 = scalar_select %p275, %s276, %s277
      %p281 = pneg %p275
      %p282 = scmp.eq.s32.totalorder %s25, 3
      %p283 = por %p281, %p282
      %p284 = scmp.ne.s32.totalorder %s276, %s279
      %p285 = scmp.eq.s32.totalorder %s25, 0
      %p286 = por %p284, %p285
      %p287 = scmp.ne.s32.totalorder %s276, %s279
      %p288 = scmp.eq.s32.totalorder %s30, 3
      %p289 = por %p287, %p288
      %p290 = scmp.ne.s32.totalorder %s279, %s280
      %p291 = scmp.eq.s32.totalorder %s30, 0
      %p292 = por %p290, %p291
      %p293 = scmp.ne.s32.totalorder %s279, %s280
      %p294 = scmp.eq.s32.totalorder %s31, 3
      %p295 = por %p293, %p294
      %p297 = scmp.ne.s32.totalorder %s280, %s296
      %p298 = scmp.eq.s32.totalorder %s31, 0
      %p299 = por %p297, %p298
      %s300 = ssub.s32 %s33, %s40
      %p301 = scmp.eq.s32.totalorder %s300, 0
      %s303 = sadd.s32 %s302, 1
      %s304 = scalar_select %p301, %s302, %s303
      %p307 = pneg %p301
      %p308 = scmp.eq.s32.totalorder %s25, 3
      %p309 = por %p307, %p308
      %p310 = scmp.ne.s32.totalorder %s302, %s305
      %p311 = scmp.eq.s32.totalorder %s25, 0
      %p312 = por %p310, %p311
      %p313 = scmp.ne.s32.totalorder %s302, %s305
      %p314 = scmp.eq.s32.totalorder %s30, 3
      %p315 = por %p313, %p314
      %p316 = scmp.ne.s32.totalorder %s305, %s306
      %p317 = scmp.eq.s32.totalorder %s30, 0
      %p318 = por %p316, %p317
      %p319 = scmp.ne.s32.totalorder %s305, %s306
      %p320 = scmp.eq.s32.totalorder %s31, 3
      %p321 = por %p319, %p320
      %p323 = scmp.ne.s32.totalorder %s306, %s322
      %p324 = scmp.eq.s32.totalorder %s31, 0
      %p325 = por %p323, %p324
      %s326 = ssub.s32 %s33, %s40
      %p327 = scmp.eq.s32.totalorder %s326, 0
      %s329 = sadd.s32 %s328, 1
      %s330 = scalar_select %p327, %s328, %s329
      %p333 = pneg %p327
      %p334 = scmp.eq.s32.totalorder %s25, 3
      %p335 = por %p333, %p334
      %p336 = scmp.ne.s32.totalorder %s328, %s331
      %p337 = scmp.eq.s32.totalorder %s25, 0
      %p338 = por %p336, %p337
      %p339 = scmp.ne.s32.totalorder %s328, %s331
      %p340 = scmp.eq.s32.totalorder %s30, 3
      %p341 = por %p339, %p340
      %p342 = scmp.ne.s32.totalorder %s331, %s332
      %p343 = scmp.eq.s32.totalorder %s30, 0
      %p344 = por %p342, %p343
      %p345 = scmp.ne.s32.totalorder %s331, %s332
      %p346 = scmp.eq.s32.totalorder %s31, 3
      %p347 = por %p345, %p346
      %p349 = scmp.ne.s32.totalorder %s332, %s348
      %p350 = scmp.eq.s32.totalorder %s31, 0
      %p351 = por %p349, %p350
      %s352 = ssub.s32 %s33, %s40
      %p353 = scmp.eq.s32.totalorder %s352, 0
      %s355 = sadd.s32 %s354, 1
      %s356 = scalar_select %p353, %s354, %s355
      %p359 = pneg %p353
      %p360 = scmp.eq.s32.totalorder %s25, 3
      %p361 = por %p359, %p360
      %p362 = scmp.ne.s32.totalorder %s354, %s357
      %p363 = scmp.eq.s32.totalorder %s25, 0
      %p364 = por %p362, %p363
      %p365 = scmp.ne.s32.totalorder %s354, %s357
      %p366 = scmp.eq.s32.totalorder %s30, 3
      %p367 = por %p365, %p366
      %p368 = scmp.ne.s32.totalorder %s357, %s358
      %p369 = scmp.eq.s32.totalorder %s30, 0
      %p370 = por %p368, %p369
      %p371 = scmp.ne.s32.totalorder %s357, %s358
      %p372 = scmp.eq.s32.totalorder %s31, 3
      %p373 = por %p371, %p372
      %p375 = scmp.ne.s32.totalorder %s358, %s374
      %p376 = scmp.eq.s32.totalorder %s31, 0
      %p377 = por %p375, %p376
      %s378 = ssub.s32 %s33, %s40
      %p379 = scmp.eq.s32.totalorder %s378, 0
      %s381 = sadd.s32 %s380, 1
      %s382 = scalar_select %p379, %s380, %s381
      %p385 = pneg %p379
      %p386 = scmp.eq.s32.totalorder %s25, 3
      %p387 = por %p385, %p386
      %p388 = scmp.ne.s32.totalorder %s380, %s383
      %p389 = scmp.eq.s32.totalorder %s25, 0
      %p390 = por %p388, %p389
      %p391 = scmp.ne.s32.totalorder %s380, %s383
      %p392 = scmp.eq.s32.totalorder %s30, 3
      %p393 = por %p391, %p392
      %p394 = scmp.ne.s32.totalorder %s383, %s384
      %p395 = scmp.eq.s32.totalorder %s30, 0
      %p396 = por %p394, %p395
      %p397 = scmp.ne.s32.totalorder %s383, %s384
      %p398 = scmp.eq.s32.totalorder %s31, 3
      %p399 = por %p397, %p398
      %p401 = scmp.ne.s32.totalorder %s384, %s400
      %p402 = scmp.eq.s32.totalorder %s31, 0
      %p403 = por %p401, %p402
      %s405 = sadd.s32 %s404, 1
      %p408 = scmp.eq.s32.totalorder %s25, 3
      %p409 = scmp.ne.s32.totalorder %s404, %s406
      %p410 = scmp.eq.s32.totalorder %s25, 0
      %p411 = por %p409, %p410
      %p412 = scmp.ne.s32.totalorder %s404, %s406
      %p413 = scmp.eq.s32.totalorder %s30, 3
      %p414 = por %p412, %p413
      %p415 = scmp.ne.s32.totalorder %s406, %s407
      %p416 = scmp.eq.s32.totalorder %s30, 0
      %p417 = por %p415, %p416
      %p418 = scmp.ne.s32.totalorder %s406, %s407
      %p419 = scmp.eq.s32.totalorder %s31, 3
      %p420 = por %p418, %p419
      %p422 = scmp.ne.s32.totalorder %s407, %s421
      %p423 = scmp.eq.s32.totalorder %s31, 0
      %p424 = por %p422, %p423
      %s426 = sadd.s32 %s425, 1
      %p429 = scmp.eq.s32.totalorder %s25, 3
      %p430 = scmp.ne.s32.totalorder %s425, %s427
      %p431 = scmp.eq.s32.totalorder %s25, 0
      %p432 = por %p430, %p431
      %p433 = scmp.ne.s32.totalorder %s425, %s427
      %p434 = scmp.eq.s32.totalorder %s30, 3
      %p435 = por %p433, %p434
      %p436 = scmp.ne.s32.totalorder %s427, %s428
      %p437 = scmp.eq.s32.totalorder %s30, 0
      %p438 = por %p436, %p437
      %p439 = scmp.ne.s32.totalorder %s427, %s428
      %p440 = scmp.eq.s32.totalorder %s31, 3
      %p441 = por %p439, %p440
      %p443 = scmp.ne.s32.totalorder %s428, %s442
      %p444 = scmp.eq.s32.totalorder %s31, 0
      %p445 = por %p443, %p444
      %s446 = ssub.s32 %s32, %s44
      %p447 = scmp.eq.s32.totalorder %s446, 0
      %s449 = sadd.s32 %s448, 1
      %s450 = scalar_select %p447, %s448, %s449
      %p453 = pneg %p447
      %p454 = scmp.eq.s32.totalorder %s25, 3
      %p455 = por %p453, %p454
      %p456 = scmp.ne.s32.totalorder %s448, %s451
      %p457 = scmp.eq.s32.totalorder %s25, 0
      %p458 = por %p456, %p457
      %p459 = scmp.ne.s32.totalorder %s448, %s451
      %p460 = scmp.eq.s32.totalorder %s30, 3
      %p461 = por %p459, %p460
      %p462 = scmp.ne.s32.totalorder %s451, %s452
      %p463 = scmp.eq.s32.totalorder %s30, 0
      %p464 = por %p462, %p463
      %p465 = scmp.ne.s32.totalorder %s451, %s452
      %p466 = scmp.eq.s32.totalorder %s31, 3
      %p467 = por %p465, %p466
      %p469 = scmp.ne.s32.totalorder %s452, %s468
      %p470 = scmp.eq.s32.totalorder %s31, 0
      %p471 = por %p469, %p470
      %p472 = scmp.le.s32.totalorder 1, %s25
      %p473 = scmp.lt.s32.totalorder %s25, 5
      %p474 = pnand %p472, %p473
      %p475 = pneg %p474
      // Predicated region
      $region9: #{one_tower_lcm_forward.1} parent=5 // pred_check
        _
      $region10: #{one_tower_lcm_forward.1} parent=5 // pred_check_branch
        %477 = sbr.rel (%p474) target = $region12
      $region11: #{one_tower_lcm_forward.1} parent=5 // pred_region
        %s478 = ssub.s32 %s25, 1
        // Predicated region
        $region13: #{one_tower_lcm_forward.1} parent=11 // pred_check
          %p479 = pneg %p84
        $region14: #{one_tower_lcm_forward.1} parent=11 // pred_check_branch
          %481 = sbr.rel (%p479) target = $region16
        $region15: #{one_tower_lcm_forward.1} parent=11 // pred_region
          _
        $region16: #{one_tower_lcm_forward.1} parent=11 // pred_fallthru
          _
        // Predicated region
        $region17: #{one_tower_lcm_forward.1} parent=11 // pred_check
          %p482 = pneg %p417
        $region18: #{one_tower_lcm_forward.1} parent=11 // pred_check_branch
          %484 = sbr.rel (%p482) target = $region20
        $region19: #{one_tower_lcm_forward.1} parent=11 // pred_region
          _
        $region20: #{one_tower_lcm_forward.1} parent=11 // pred_fallthru
          _
        // Predicated region
        $region21: #{one_tower_lcm_forward.1} parent=11 // pred_check
          %p485 = pneg %p438
        $region22: #{one_tower_lcm_forward.1} parent=11 // pred_check_branch
          %487 = sbr.rel (%p485) target = $region24
        $region23: #{one_tower_lcm_forward.1} parent=11 // pred_region
          _
        $region24: #{one_tower_lcm_forward.1} parent=11 // pred_fallthru
          _
      $region12: #{one_tower_lcm_forward.1} parent=5 // pred_fallthru
        _
      %p488 = scmp.lt.s32.totalorder %s25, 4
      // Predicated region
      $region25: #{one_tower_lcm_forward.1} parent=5 // pred_check
        %p489 = pneg %p488
      $region26: #{one_tower_lcm_forward.1} parent=5 // pred_check_branch
        %491 = sbr.rel (%p489) target = $region28
      $region27: #{one_tower_lcm_forward.1} parent=5 // pred_region
        // Predicated region
        $region29: #{one_tower_lcm_forward.1} parent=27 // pred_check
          %p492 = pneg %p57
        $region30: #{one_tower_lcm_forward.1} parent=27 // pred_check_branch
          %494 = sbr.rel (%p492) target = $region32
        $region31: #{one_tower_lcm_forward.1} parent=27 // pred_region
          %p495 = scmp.lt.s32.totalorder %s32, 1
          %s496 = scalar_select %p495, %s32, 1
          %s497 = smul.addr %s496, 8
          %s498 = scalar_lea.vmem %s0, %s497
        $region32: #{one_tower_lcm_forward.1} parent=27 // pred_fallthru
          _
        // Predicated region
        $region33: #{one_tower_lcm_forward.1} parent=27 // pred_check
          %p499 = pneg %p104
        $region34: #{one_tower_lcm_forward.1} parent=27 // pred_check_branch
          %501 = sbr.rel (%p499) target = $region36
        $region35: #{one_tower_lcm_forward.1} parent=27 // pred_region
          %p502 = scmp.lt.s32.totalorder %s33, 1
          %s503 = scalar_select %p502, %s33, 1
          %s504 = smul.addr %s503, 48
          %s505 = smul.addr %s504, 4
          %s506 = scalar_lea.vmem %s2, %s505
        $region36: #{one_tower_lcm_forward.1} parent=27 // pred_fallthru
          _
        // Predicated region
        $region37: #{one_tower_lcm_forward.1} parent=27 // pred_check
          %p507 = pneg %p130
        $region38: #{one_tower_lcm_forward.1} parent=27 // pred_check_branch
          %509 = sbr.rel (%p507) target = $region40
        $region39: #{one_tower_lcm_forward.1} parent=27 // pred_region
          %p510 = scmp.lt.s32.totalorder %s33, 1
          %s511 = scalar_select %p510, %s33, 1
          %s512 = smul.addr %s511, 12
          %s513 = scalar_lea.vmem %s3, %s512
        $region40: #{one_tower_lcm_forward.1} parent=27 // pred_fallthru
          _
        // Predicated region
        $region41: #{one_tower_lcm_forward.1} parent=27 // pred_check
          %p514 = pneg %p156
        $region42: #{one_tower_lcm_forward.1} parent=27 // pred_check_branch
          %516 = sbr.rel (%p514) target = $region44
        $region43: #{one_tower_lcm_forward.1} parent=27 // pred_region
          %p517 = scmp.lt.s32.totalorder %s33, 1
          %s518 = scalar_select %p517, %s33, 1
          %s519 = smul.addr %s518, 4
          %s520 = smul.addr %s519, 4
          %s521 = scalar_lea.vmem %s4, %s520
        $region44: #{one_tower_lcm_forward.1} parent=27 // pred_fallthru
          _
        // Predicated region
        $region45: #{one_tower_lcm_forward.1} parent=27 // pred_check
          %p522 = pneg %p182
        $region46: #{one_tower_lcm_forward.1} parent=27 // pred_check_branch
          %524 = sbr.rel (%p522) target = $region48
        $region47: #{one_tower_lcm_forward.1} parent=27 // pred_region
          %p525 = scmp.lt.s32.totalorder %s33, 1
          %s526 = scalar_select %p525, %s33, 1
          %s527 = scalar_lea.vmem %s5, %s526
        $region48: #{one_tower_lcm_forward.1} parent=27 // pred_fallthru
          _
        // Predicated region
        $region49: #{one_tower_lcm_forward.1} parent=27 // pred_check
          %p528 = pneg %p208
        $region50: #{one_tower_lcm_forward.1} parent=27 // pred_check_branch
          %530 = sbr.rel (%p528) target = $region52
        $region51: #{one_tower_lcm_forward.1} parent=27 // pred_region
          %p531 = scmp.lt.s32.totalorder %s33, 1
          %s532 = scalar_select %p531, %s33, 1
          %s533 = scalar_lea.vmem %s6, %s532
        $region52: #{one_tower_lcm_forward.1} parent=27 // pred_fallthru
          _
        // Predicated region
        $region53: #{one_tower_lcm_forward.1} parent=27 // pred_check
          %p534 = pneg %p234
        $region54: #{one_tower_lcm_forward.1} parent=27 // pred_check_branch
          %536 = sbr.rel (%p534) target = $region56
        $region55: #{one_tower_lcm_forward.1} parent=27 // pred_region
          %p537 = scmp.lt.s32.totalorder %s33, 1
          %s538 = scalar_select %p537, %s33, 1
          %s539 = scalar_lea.vmem %s7, %s538
        $region56: #{one_tower_lcm_forward.1} parent=27 // pred_fallthru
          _
        // Predicated region
        $region57: #{one_tower_lcm_forward.1} parent=27 // pred_check
          %p540 = pneg %p260
        $region58: #{one_tower_lcm_forward.1} parent=27 // pred_check_branch
          %542 = sbr.rel (%p540) target = $region60
        $region59: #{one_tower_lcm_forward.1} parent=27 // pred_region
          %p543 = scmp.lt.s32.totalorder %s33, 1
          %s544 = scalar_select %p543, %s33, 1
          %s545 = smul.addr %s544, 4
          %s546 = smul.addr %s545, 4
          %s547 = scalar_lea.vmem %s8, %s546
        $region60: #{one_tower_lcm_forward.1} parent=27 // pred_fallthru
          _
        // Predicated region
        $region61: #{one_tower_lcm_forward.1} parent=27 // pred_check
          %p548 = pneg %p286
        $region62: #{one_tower_lcm_forward.1} parent=27 // pred_check_branch
          %550 = sbr.rel (%p548) target = $region64
        $region63: #{one_tower_lcm_forward.1} parent=27 // pred_region
          %p551 = scmp.lt.s32.totalorder %s33, 1
          %s552 = scalar_select %p551, %s33, 1
          %s553 = scalar_lea.vmem %s9, %s552
        $region64: #{one_tower_lcm_forward.1} parent=27 // pred_fallthru
          _
        // Predicated region
        $region65: #{one_tower_lcm_forward.1} parent=27 // pred_check
          %p554 = pneg %p312
        $region66: #{one_tower_lcm_forward.1} parent=27 // pred_check_branch
          %556 = sbr.rel (%p554) target = $region68
        $region67: #{one_tower_lcm_forward.1} parent=27 // pred_region
          %p557 = scmp.lt.s32.totalorder %s33, 1
          %s558 = scalar_select %p557, %s33, 1
          %s559 = smul.addr %s558, 8
          %s560 = smul.addr %s559, 4
          %s561 = scalar_lea.vmem %s10, %s560
        $region68: #{one_tower_lcm_forward.1} parent=27 // pred_fallthru
          _
        // Predicated region
        $region69: #{one_tower_lcm_forward.1} parent=27 // pred_check
          %p562 = pneg %p338
        $region70: #{one_tower_lcm_forward.1} parent=27 // pred_check_branch
          %564 = sbr.rel (%p562) target = $region72
        $region71: #{one_tower_lcm_forward.1} parent=27 // pred_region
          %p565 = scmp.lt.s32.totalorder %s33, 1
          %s566 = scalar_select %p565, %s33, 1
          %s567 = scalar_lea.vmem %s11, %s566
        $region72: #{one_tower_lcm_forward.1} parent=27 // pred_fallthru
          _
        // Predicated region
        $region73: #{one_tower_lcm_forward.1} parent=27 // pred_check
          %p568 = pneg %p364
        $region74: #{one_tower_lcm_forward.1} parent=27 // pred_check_branch
          %570 = sbr.rel (%p568) target = $region76
        $region75: #{one_tower_lcm_forward.1} parent=27 // pred_region
          %p571 = scmp.lt.s32.totalorder %s33, 1
          %s572 = scalar_select %p571, %s33, 1
          %s573 = scalar_lea.vmem %s12, %s572
        $region76: #{one_tower_lcm_forward.1} parent=27 // pred_fallthru
          _
        // Predicated region
        $region77: #{one_tower_lcm_forward.1} parent=27 // pred_check
          %p574 = pneg %p390
        $region78: #{one_tower_lcm_forward.1} parent=27 // pred_check_branch
          %576 = sbr.rel (%p574) target = $region80
        $region79: #{one_tower_lcm_forward.1} parent=27 // pred_region
          %p577 = scmp.lt.s32.totalorder %s33, 1
          %s578 = scalar_select %p577, %s33, 1
          %s579 = scalar_lea.vmem %s13, %s578
        $region80: #{one_tower_lcm_forward.1} parent=27 // pred_fallthru
          _
      $region28: #{one_tower_lcm_forward.1} parent=5 // pred_fallthru
        _
      %p580 = scmp.le.s32.totalorder 1, %s25
      %p581 = scmp.lt.s32.totalorder %s25, 5
      %p582 = pnand %p580, %p581
      %p583 = pneg %p582
      // Predicated region
      $region81: #{one_tower_lcm_forward.1} parent=5 // pred_check
        _
      $region82: #{one_tower_lcm_forward.1} parent=5 // pred_check_branch
        %585 = sbr.rel (%p582) target = $region84
      $region83: #{one_tower_lcm_forward.1} parent=5 // pred_region
        %s586 = ssub.s32 %s25, 1
        %p587 = scmp.lt.s32.totalorder %s34, 1
        %s588 = scalar_select %p587, %s34, 1
        %s589 = smul.addr %s588, 8
        %s590 = scalar_lea.vmem %s0, %s589
        %p591 = pneg %p63
        %p592 = pneg %p60
        %p593 = pneg %p84
        %p594 = pneg %p81
        %p595 = scmp.lt.s32.totalorder %s35, 1
        %s596 = scalar_select %p595, %s35, 1
        %s597 = smul.addr %s596, 48
        %s598 = smul.addr %s597, 4
        %s599 = scalar_lea.vmem %s2, %s598
        %p600 = pneg %p110
        %p601 = pneg %p107
        %p602 = scmp.lt.s32.totalorder %s35, 1
        %s603 = scalar_select %p602, %s35, 1
        %s604 = smul.addr %s603, 12
        %s605 = scalar_lea.vmem %s3, %s604
        %p606 = pneg %p136
        %p607 = pneg %p133
        %p608 = scmp.lt.s32.totalorder %s35, 1
        %s609 = scalar_select %p608, %s35, 1
        %s610 = smul.addr %s609, 4
        %s611 = smul.addr %s610, 4
        %s612 = scalar_lea.vmem %s4, %s611
        %p613 = pneg %p162
        %p614 = pneg %p159
        %p615 = scmp.lt.s32.totalorder %s35, 1
        %s616 = scalar_select %p615, %s35, 1
        %s617 = scalar_lea.vmem %s5, %s616
        %p618 = pneg %p188
        %p619 = pneg %p185
        %p620 = scmp.lt.s32.totalorder %s35, 1
        %s621 = scalar_select %p620, %s35, 1
        %s622 = scalar_lea.vmem %s6, %s621
        %p623 = pneg %p214
        %p624 = pneg %p211
        %p625 = scmp.lt.s32.totalorder %s35, 1
        %s626 = scalar_select %p625, %s35, 1
        %s627 = scalar_lea.vmem %s7, %s626
        %p628 = pneg %p240
        %p629 = pneg %p237
        %p630 = scmp.lt.s32.totalorder %s35, 1
        %s631 = scalar_select %p630, %s35, 1
        %s632 = smul.addr %s631, 4
        %s633 = smul.addr %s632, 4
        %s634 = scalar_lea.vmem %s8, %s633
        %p635 = pneg %p266
        %p636 = pneg %p263
        %p637 = scmp.lt.s32.totalorder %s35, 1
        %s638 = scalar_select %p637, %s35, 1
        %s639 = scalar_lea.vmem %s9, %s638
        %p640 = pneg %p292
        %p641 = pneg %p289
        %p642 = scmp.lt.s32.totalorder %s35, 1
        %s643 = scalar_select %p642, %s35, 1
        %s644 = smul.addr %s643, 8
        %s645 = smul.addr %s644, 4
        %s646 = scalar_lea.vmem %s10, %s645
        %p647 = pneg %p318
        %p648 = pneg %p315
        %p649 = scmp.lt.s32.totalorder %s35, 1
        %s650 = scalar_select %p649, %s35, 1
        %s651 = scalar_lea.vmem %s11, %s650
        %p652 = pneg %p344
        %p653 = pneg %p341
        %p654 = scmp.lt.s32.totalorder %s35, 1
        %s655 = scalar_select %p654, %s35, 1
        %s656 = scalar_lea.vmem %s12, %s655
        %p657 = pneg %p370
        %p658 = pneg %p367
        %p659 = scmp.lt.s32.totalorder %s35, 1
        %s660 = scalar_select %p659, %s35, 1
        %s661 = scalar_lea.vmem %s13, %s660
        %p662 = pneg %p396
        %p663 = pneg %p393
        %p664 = pneg %p417
        %p665 = pneg %p414
        %p666 = pneg %p438
        %p667 = pneg %p435
        %p668 = pneg %p464
        %p669 = pneg %p461
        %s670 = sand.u32 %s451, 1
        %s671 = scalar_lea.sflag [#allocation4], %s670
        %s672 = sand.u32 %s451, 1
        %s673 = smul.addr %s672, 8
        %s674 = scalar_lea.vmem [#allocation3], %s673
        %p675 = scmp.lt.s32.totalorder %s34, 1
        %s676 = scalar_select %p675, %s34, 1
        %s677 = smul.addr %s676, 8
        %s678 = scalar_lea.vmem %s0, %s677
        %p679 = scmp.lt.s32.totalorder %s35, 1
        %s680 = scalar_select %p679, %s35, 1
        %s681 = smul.addr %s680, 48
        %s682 = smul.addr %s681, 4
        %s683 = scalar_lea.vmem %s2, %s682
        %p684 = scmp.lt.s32.totalorder %s35, 1
        %s685 = scalar_select %p684, %s35, 1
        %s686 = smul.addr %s685, 12
        %s687 = scalar_lea.vmem %s3, %s686
        %p688 = scmp.lt.s32.totalorder %s35, 1
        %s689 = scalar_select %p688, %s35, 1
        %s690 = smul.addr %s689, 4
        %s691 = smul.addr %s690, 4
        %s692 = scalar_lea.vmem %s4, %s691
        %p693 = scmp.lt.s32.totalorder %s35, 1
        %s694 = scalar_select %p693, %s35, 1
        %s695 = scalar_lea.vmem %s5, %s694
        %p696 = scmp.lt.s32.totalorder %s35, 1
        %s697 = scalar_select %p696, %s35, 1
        %s698 = scalar_lea.vmem %s6, %s697
        %p699 = scmp.lt.s32.totalorder %s35, 1
        %s700 = scalar_select %p699, %s35, 1
        %s701 = scalar_lea.vmem %s7, %s700
        %p702 = scmp.lt.s32.totalorder %s35, 1
        %s703 = scalar_select %p702, %s35, 1
        %s704 = smul.addr %s703, 4
        %s705 = smul.addr %s704, 4
        %s706 = scalar_lea.vmem %s8, %s705
        %p707 = scmp.lt.s32.totalorder %s35, 1
        %s708 = scalar_select %p707, %s35, 1
        %s709 = scalar_lea.vmem %s9, %s708
        %p710 = scmp.lt.s32.totalorder %s35, 1
        %s711 = scalar_select %p710, %s35, 1
        %s712 = smul.addr %s711, 8
        %s713 = smul.addr %s712, 4
        %s714 = scalar_lea.vmem %s10, %s713
        %p715 = scmp.lt.s32.totalorder %s35, 1
        %s716 = scalar_select %p715, %s35, 1
        %s717 = scalar_lea.vmem %s11, %s716
        %p718 = scmp.lt.s32.totalorder %s35, 1
        %s719 = scalar_select %p718, %s35, 1
        %s720 = scalar_lea.vmem %s12, %s719
        %p721 = scmp.lt.s32.totalorder %s35, 1
        %s722 = scalar_select %p721, %s35, 1
        %s723 = scalar_lea.vmem %s13, %s722
        %p725 = scmp.eq.s32.totalorder %s35, 0
        // Predicated region
        $region85: #{one_tower_lcm_forward.1} parent=83 // pred_check
          %p726 = pneg %p725
        $region86: #{one_tower_lcm_forward.1} parent=83 // pred_check_branch
          %728 = sbr.rel (%p726) target = $region88
        $region87: #{one_tower_lcm_forward.1} parent=83 // pred_region
          %v729 = vld [vmem:[%s678] sm:$0xff]
          %v730 = vld [vmem:[%s1] sm:$0xff]
          %v731 = vadd.f32 %v729, %v730
          %vm732 = vcmask 261120
          %733 = vst.msk [vmem:[#allocation2] sm:$0xff] %vm732, %v731
        $region88: #{one_tower_lcm_forward.1} parent=83 // pred_fallthru
          _
        %v734 = vld [vmem:[#allocation2] sm:$0xff]
        %v735 = vpack.c.bf16 %v734, %v734
        %v736 = vld [vmem:[%s683] sm:$0xf]
        %v737 = vld [vmem:[%s683 + $0x4] sm:$0xf]
        %v738 = vld [vmem:[%s683 + $0x8] sm:$0xf]
        %v739 = vld [vmem:[%s683 + $0xc] sm:$0xf]
        %v740 = vld [vmem:[%s683 + $0x10] sm:$0xf]
        %v741 = vld [vmem:[%s683 + $0x14] sm:$0xf]
        %v742 = vld [vmem:[%s683 + $0x18] sm:$0xf]
        %v743 = vld [vmem:[%s683 + $0x1c] sm:$0xf]
        %v744 = vld [vmem:[%s683 + $0x20] sm:$0xf]
        %v745 = vld [vmem:[%s683 + $0x24] sm:$0xf]
        %v746 = vld [vmem:[%s683 + $0x28] sm:$0xf]
        %v747 = vld [vmem:[%s683 + $0x2c] sm:$0xf]
        %v748 = vld [vmem:[%s683 + $0x30] sm:$0xf]
        %v749 = vld [vmem:[%s683 + $0x34] sm:$0xf]
        %v750 = vld [vmem:[%s683 + $0x38] sm:$0xf]
        %v751 = vld [vmem:[%s683 + $0x3c] sm:$0xf]
        %v752 = vld [vmem:[%s683 + $0x40] sm:$0xf]
        %v753 = vld [vmem:[%s683 + $0x44] sm:$0xf]
        %v754 = vld [vmem:[%s683 + $0x48] sm:$0xf]
        %v755 = vld [vmem:[%s683 + $0x4c] sm:$0xf]
        %v756 = vld [vmem:[%s683 + $0x50] sm:$0xf]
        %v757 = vld [vmem:[%s683 + $0x54] sm:$0xf]
        %v758 = vld [vmem:[%s683 + $0x58] sm:$0xf]
        %v759 = vld [vmem:[%s683 + $0x5c] sm:$0xf]
        %v760 = vld [vmem:[%s683 + $0x60] sm:$0xf]
        %v761 = vld [vmem:[%s683 + $0x64] sm:$0xf]
        %v762 = vld [vmem:[%s683 + $0x68] sm:$0xf]
        %v763 = vld [vmem:[%s683 + $0x6c] sm:$0xf]
        %v764 = vld [vmem:[%s683 + $0x70] sm:$0xf]
        %v765 = vld [vmem:[%s683 + $0x74] sm:$0xf]
        %v766 = vld [vmem:[%s683 + $0x78] sm:$0xf]
        %v767 = vld [vmem:[%s683 + $0x7c] sm:$0xf]
        %v768 = vld [vmem:[%s683 + $0x80] sm:$0xf]
        %v769 = vld [vmem:[%s683 + $0x84] sm:$0xf]
        %v770 = vld [vmem:[%s683 + $0x88] sm:$0xf]
        %v771 = vld [vmem:[%s683 + $0x8c] sm:$0xf]
        %v772 = vld [vmem:[%s683 + $0x90] sm:$0xf]
        %v773 = vld [vmem:[%s683 + $0x94] sm:$0xf]
        %v774 = vld [vmem:[%s683 + $0x98] sm:$0xf]
        %v775 = vld [vmem:[%s683 + $0x9c] sm:$0xf]
        %v776 = vld [vmem:[%s683 + $0xa0] sm:$0xf]
        %v777 = vld [vmem:[%s683 + $0xa4] sm:$0xf]
        %v778 = vld [vmem:[%s683 + $0xa8] sm:$0xf]
        %v779 = vld [vmem:[%s683 + $0xac] sm:$0xf]
        %v780 = vld [vmem:[%s683 + $0xb0] sm:$0xf]
        %v781 = vld [vmem:[%s683 + $0xb4] sm:$0xf]
        %v782 = vld [vmem:[%s683 + $0xb8] sm:$0xf]
        %v783 = vld [vmem:[%s683 + $0xbc] sm:$0xf]
        %v784 = vld [vmem:[%s687] sm:$0x1]
        %v785 = vld [vmem:[%s687 + $0x1] sm:$0x1]
        %v786 = vld [vmem:[%s687 + $0x2] sm:$0x1]
        %v787 = vld [vmem:[%s687 + $0x3] sm:$0x1]
        %v788 = vld [vmem:[%s687 + $0x4] sm:$0x1]
        %v789 = vld [vmem:[%s687 + $0x5] sm:$0x1]
        %v790 = vld [vmem:[%s687 + $0x6] sm:$0x1]
        %v791 = vld [vmem:[%s687 + $0x7] sm:$0x1]
        %v792 = vld [vmem:[%s687 + $0x8] sm:$0x1]
        %v793 = vld [vmem:[%s687 + $0x9] sm:$0x1]
        %v794 = vld [vmem:[%s687 + $0xa] sm:$0x1]
        %v795 = vld [vmem:[%s687 + $0xb] sm:$0x1]
        %v808 = vlaneseq
        %v809 = vshrl.u32 %v808, 7
        %v810 = vsub.s32 0, %v809
        %v811 = vrot.slane %v784, %v810
        %v812 = vlaneseq
        %v813 = vshrl.u32 %v812, 7
        %v814 = vsub.s32 0, %v813
        %v815 = vrot.slane %v785, %v814
        %v816 = vlaneseq
        %v817 = vshrl.u32 %v816, 7
        %v818 = vsub.s32 0, %v817
        %v819 = vrot.slane %v786, %v818
        %v820 = vlaneseq
        %v821 = vshrl.u32 %v820, 7
        %v822 = vsub.s32 0, %v821
        %v823 = vrot.slane %v787, %v822
        %v824 = vlaneseq
        %v825 = vshrl.u32 %v824, 7
        %v826 = vsub.s32 0, %v825
        %v827 = vrot.slane %v788, %v826
        %v828 = vlaneseq
        %v829 = vshrl.u32 %v828, 7
        %v830 = vsub.s32 0, %v829
        %v831 = vrot.slane %v789, %v830
        %v832 = vlaneseq
        %v833 = vshrl.u32 %v832, 7
        %v834 = vsub.s32 0, %v833
        %v835 = vrot.slane %v790, %v834
        %v836 = vlaneseq
        %v837 = vshrl.u32 %v836, 7
        %v838 = vsub.s32 0, %v837
        %v839 = vrot.slane %v791, %v838
        %v840 = vlaneseq
        %v841 = vshrl.u32 %v840, 7
        %v842 = vsub.s32 0, %v841
        %v843 = vrot.slane %v792, %v842
        %v844 = vlaneseq
        %v845 = vshrl.u32 %v844, 7
        %v846 = vsub.s32 0, %v845
        %v847 = vrot.slane %v793, %v846
        %v848 = vlaneseq
        %v849 = vshrl.u32 %v848, 7
        %v850 = vsub.s32 0, %v849
        %v851 = vrot.slane %v794, %v850
        %v852 = vlaneseq
        %v853 = vshrl.u32 %v852, 7
        %v854 = vsub.s32 0, %v853
        %v855 = vrot.slane %v795, %v854
        %v872 = vunpack.c.l.b16 %v736
        %v873 = vunpack.c.l.b16 %v737
        %v874 = vunpack.c.l.b16 %v738
        %v875 = vunpack.c.l.b16 %v739
        %v876 = vpack.c.b16 %v873, %v872
        %v877 = vpack.c.b16 %v875, %v874
        %vm880 = vcmask 261120
        %v882 = vsel %vm880, %v735, 0
        %884 = vmatprep.subr.bf16.mxu0 0
        %885 = vmatpush1.bf16.msra.mxu0 0
        %886 = vmatprep.subr.bf16.mxu0 0
        %887 = vmatpush1.bf16.msra.mxu0 0
        %888 = vmatprep.subr.bf16.mxu0 0
        %889 = vmatpush1.bf16.msra.mxu0 0
        %890 = vmatprep.subr.bf16.mxu0 0
        %891 = vmatpush1.bf16.msra.mxu0 0
        %892 = vmatprep.subr.bf16.mxu0 0
        %893 = vmatpush1.bf16.msra.mxu0 0
        %894 = vmatprep.subr.bf16.mxu0 0
        %895 = vmatpush1.bf16.msra.mxu0 0
        %896 = vmatprep.subr.bf16.mxu0 0
        %897 = vmatpush1.bf16.msra.mxu0 %v877
        %898 = vmatprep.subr.bf16.mxu0 0
        %899 = vmatpush1.bf16.msra.mxu0 %v876
        %900 = vmatprep.subr.bf16.mxu0 0
        %901 = vmatpush2.bf16.msra.mxu0 0
        %902 = vmatprep.subr.bf16.mxu0 0
        %903 = vmatpush2.bf16.msra.mxu0 0
        %904 = vmatprep.subr.bf16.mxu0 0
        %905 = vmatpush2.bf16.msra.mxu0 0
        %906 = vmatprep.subr.bf16.mxu0 0
        %907 = vmatpush2.bf16.msra.mxu0 0
        %908 = vmatprep.subr.bf16.mxu0 0
        %909 = vmatpush2.bf16.msra.mxu0 0
        %910 = vmatprep.subr.bf16.mxu0 0
        %911 = vmatpush2.bf16.msra.mxu0 0
        %912 = vmatprep.subr.bf16.mxu0 0
        %913 = vmatpush2.bf16.msra.mxu0 0
        %914 = vmatprep.subr.bf16.mxu0 0
        %915 = vmatpush2.bf16.msra.mxu0 0
        %916 = vmatprep.mubr.bf16.mxu0 0
        %917 = vmatmul.mubr.bf16.gmra.mxu0 %v882
        %v918 = vpop.f32.mrf.mxu0
        %v919 = vadd.f32 %v811, %v918
        %v920 = vpop.f32.mrf.mxu0
        %v921 = vpop.f32.mrf.mxu0
        %v922 = vpop.f32.mrf.mxu0
        %923 = vdwg.mxu0
        %v928 = vunpack.c.l.b16 %v740
        %v929 = vunpack.c.l.b16 %v741
        %v930 = vunpack.c.l.b16 %v742
        %v931 = vunpack.c.l.b16 %v743
        %v932 = vpack.c.b16 %v929, %v928
        %v933 = vpack.c.b16 %v931, %v930
        %936 = vmatprep.subr.bf16.mxu0 0
        %937 = vmatpush1.bf16.msra.mxu0 0
        %938 = vmatprep.subr.bf16.mxu0 0
        %939 = vmatpush1.bf16.msra.mxu0 0
        %940 = vmatprep.subr.bf16.mxu0 0
        %941 = vmatpush1.bf16.msra.mxu0 0
        %942 = vmatprep.subr.bf16.mxu0 0
        %943 = vmatpush1.bf16.msra.mxu0 0
        %944 = vmatprep.subr.bf16.mxu0 0
        %945 = vmatpush1.bf16.msra.mxu0 0
        %946 = vmatprep.subr.bf16.mxu0 0
        %947 = vmatpush1.bf16.msra.mxu0 0
        %948 = vmatprep.subr.bf16.mxu0 0
        %949 = vmatpush1.bf16.msra.mxu0 %v933
        %950 = vmatprep.subr.bf16.mxu0 0
        %951 = vmatpush1.bf16.msra.mxu0 %v932
        %952 = vmatprep.subr.bf16.mxu0 0
        %953 = vmatpush2.bf16.msra.mxu0 0
        %954 = vmatprep.subr.bf16.mxu0 0
        %955 = vmatpush2.bf16.msra.mxu0 0
        %956 = vmatprep.subr.bf16.mxu0 0
        %957 = vmatpush2.bf16.msra.mxu0 0
        %958 = vmatprep.subr.bf16.mxu0 0
        %959 = vmatpush2.bf16.msra.mxu0 0
        %960 = vmatprep.subr.bf16.mxu0 0
        %961 = vmatpush2.bf16.msra.mxu0 0
        %962 = vmatprep.subr.bf16.mxu0 0
        %963 = vmatpush2.bf16.msra.mxu0 0
        %964 = vmatprep.subr.bf16.mxu0 0
        %965 = vmatpush2.bf16.msra.mxu0 0
        %966 = vmatprep.subr.bf16.mxu0 0
        %967 = vmatpush2.bf16.msra.mxu0 0
        %968 = vmatprep.mubr.bf16.mxu0 0
        %969 = vmatmul.mubr.bf16.gmra.mxu0 %v882
        %v970 = vpop.f32.mrf.mxu0
        %v971 = vadd.f32 %v815, %v970
        %v972 = vpop.f32.mrf.mxu0
        %v973 = vpop.f32.mrf.mxu0
        %v974 = vpop.f32.mrf.mxu0
        %975 = vdwg.mxu0
        %v980 = vunpack.c.l.b16 %v744
        %v981 = vunpack.c.l.b16 %v745
        %v982 = vunpack.c.l.b16 %v746
        %v983 = vunpack.c.l.b16 %v747
        %v984 = vpack.c.b16 %v981, %v980
        %v985 = vpack.c.b16 %v983, %v982
        %988 = vmatprep.subr.bf16.mxu0 0
        %989 = vmatpush1.bf16.msra.mxu0 0
        %990 = vmatprep.subr.bf16.mxu0 0
        %991 = vmatpush1.bf16.msra.mxu0 0
        %992 = vmatprep.subr.bf16.mxu0 0
        %993 = vmatpush1.bf16.msra.mxu0 0
        %994 = vmatprep.subr.bf16.mxu0 0
        %995 = vmatpush1.bf16.msra.mxu0 0
        %996 = vmatprep.subr.bf16.mxu0 0
        %997 = vmatpush1.bf16.msra.mxu0 0
        %998 = vmatprep.subr.bf16.mxu0 0
        %999 = vmatpush1.bf16.msra.mxu0 0
        %1000 = vmatprep.subr.bf16.mxu0 0
        %1001 = vmatpush1.bf16.msra.mxu0 %v985
        %1002 = vmatprep.subr.bf16.mxu0 0
        %1003 = vmatpush1.bf16.msra.mxu0 %v984
        %1004 = vmatprep.subr.bf16.mxu0 0
        %1005 = vmatpush2.bf16.msra.mxu0 0
        %1006 = vmatprep.subr.bf16.mxu0 0
        %1007 = vmatpush2.bf16.msra.mxu0 0
        %1008 = vmatprep.subr.bf16.mxu0 0
        %1009 = vmatpush2.bf16.msra.mxu0 0
        %1010 = vmatprep.subr.bf16.mxu0 0
        %1011 = vmatpush2.bf16.msra.mxu0 0
        %1012 = vmatprep.subr.bf16.mxu0 0
        %1013 = vmatpush2.bf16.msra.mxu0 0
        %1014 = vmatprep.subr.bf16.mxu0 0
        %1015 = vmatpush2.bf16.msra.mxu0 0
        %1016 = vmatprep.subr.bf16.mxu0 0
        %1017 = vmatpush2.bf16.msra.mxu0 0
        %1018 = vmatprep.subr.bf16.mxu0 0
        %1019 = vmatpush2.bf16.msra.mxu0 0
        %1020 = vmatprep.mubr.bf16.mxu0 0
        %1021 = vmatmul.mubr.bf16.gmra.mxu0 %v882
        %v1022 = vpop.f32.mrf.mxu0
        %v1023 = vadd.f32 %v819, %v1022
        %v1024 = vpop.f32.mrf.mxu0
        %v1025 = vpop.f32.mrf.mxu0
        %v1026 = vpop.f32.mrf.mxu0
        %1027 = vdwg.mxu0
        %v1032 = vunpack.c.l.b16 %v748
        %v1033 = vunpack.c.l.b16 %v749
        %v1034 = vunpack.c.l.b16 %v750
        %v1035 = vunpack.c.l.b16 %v751
        %v1036 = vpack.c.b16 %v1033, %v1032
        %v1037 = vpack.c.b16 %v1035, %v1034
        %1040 = vmatprep.subr.bf16.mxu0 0
        %1041 = vmatpush1.bf16.msra.mxu0 0
        %1042 = vmatprep.subr.bf16.mxu0 0
        %1043 = vmatpush1.bf16.msra.mxu0 0
        %1044 = vmatprep.subr.bf16.mxu0 0
        %1045 = vmatpush1.bf16.msra.mxu0 0
        %1046 = vmatprep.subr.bf16.mxu0 0
        %1047 = vmatpush1.bf16.msra.mxu0 0
        %1048 = vmatprep.subr.bf16.mxu0 0
        %1049 = vmatpush1.bf16.msra.mxu0 0
        %1050 = vmatprep.subr.bf16.mxu0 0
        %1051 = vmatpush1.bf16.msra.mxu0 0
        %1052 = vmatprep.subr.bf16.mxu0 0
        %1053 = vmatpush1.bf16.msra.mxu0 %v1037
        %1054 = vmatprep.subr.bf16.mxu0 0
        %1055 = vmatpush1.bf16.msra.mxu0 %v1036
        %1056 = vmatprep.subr.bf16.mxu0 0
        %1057 = vmatpush2.bf16.msra.mxu0 0
        %1058 = vmatprep.subr.bf16.mxu0 0
        %1059 = vmatpush2.bf16.msra.mxu0 0
        %1060 = vmatprep.subr.bf16.mxu0 0
        %1061 = vmatpush2.bf16.msra.mxu0 0
        %1062 = vmatprep.subr.bf16.mxu0 0
        %1063 = vmatpush2.bf16.msra.mxu0 0
        %1064 = vmatprep.subr.bf16.mxu0 0
        %1065 = vmatpush2.bf16.msra.mxu0 0
        %1066 = vmatprep.subr.bf16.mxu0 0
        %1067 = vmatpush2.bf16.msra.mxu0 0
        %1068 = vmatprep.subr.bf16.mxu0 0
        %1069 = vmatpush2.bf16.msra.mxu0 0
        %1070 = vmatprep.subr.bf16.mxu0 0
        %1071 = vmatpush2.bf16.msra.mxu0 0
        %1072 = vmatprep.mubr.bf16.mxu0 0
        %1073 = vmatmul.mubr.bf16.gmra.mxu0 %v882
        %v1074 = vpop.f32.mrf.mxu0
        %v1075 = vadd.f32 %v823, %v1074
        %v1076 = vpop.f32.mrf.mxu0
        %v1077 = vpop.f32.mrf.mxu0
        %v1078 = vpop.f32.mrf.mxu0
        %1079 = vdwg.mxu0
        %v1084 = vunpack.c.l.b16 %v752
        %v1085 = vunpack.c.l.b16 %v753
        %v1086 = vunpack.c.l.b16 %v754
        %v1087 = vunpack.c.l.b16 %v755
        %v1088 = vpack.c.b16 %v1085, %v1084
        %v1089 = vpack.c.b16 %v1087, %v1086
        %1092 = vmatprep.subr.bf16.mxu0 0
        %1093 = vmatpush1.bf16.msra.mxu0 0
        %1094 = vmatprep.subr.bf16.mxu0 0
        %1095 = vmatpush1.bf16.msra.mxu0 0
        %1096 = vmatprep.subr.bf16.mxu0 0
        %1097 = vmatpush1.bf16.msra.mxu0 0
        %1098 = vmatprep.subr.bf16.mxu0 0
        %1099 = vmatpush1.bf16.msra.mxu0 0
        %1100 = vmatprep.subr.bf16.mxu0 0
        %1101 = vmatpush1.bf16.msra.mxu0 0
        %1102 = vmatprep.subr.bf16.mxu0 0
        %1103 = vmatpush1.bf16.msra.mxu0 0
        %1104 = vmatprep.subr.bf16.mxu0 0
        %1105 = vmatpush1.bf16.msra.mxu0 %v1089
        %1106 = vmatprep.subr.bf16.mxu0 0
        %1107 = vmatpush1.bf16.msra.mxu0 %v1088
        %1108 = vmatprep.subr.bf16.mxu0 0
        %1109 = vmatpush2.bf16.msra.mxu0 0
        %1110 = vmatprep.subr.bf16.mxu0 0
        %1111 = vmatpush2.bf16.msra.mxu0 0
        %1112 = vmatprep.subr.bf16.mxu0 0
        %1113 = vmatpush2.bf16.msra.mxu0 0
        %1114 = vmatprep.subr.bf16.mxu0 0
        %1115 = vmatpush2.bf16.msra.mxu0 0
        %1116 = vmatprep.subr.bf16.mxu0 0
        %1117 = vmatpush2.bf16.msra.mxu0 0
        %1118 = vmatprep.subr.bf16.mxu0 0
        %1119 = vmatpush2.bf16.msra.mxu0 0
        %1120 = vmatprep.subr.bf16.mxu0 0
        %1121 = vmatpush2.bf16.msra.mxu0 0
        %1122 = vmatprep.subr.bf16.mxu0 0
        %1123 = vmatpush2.bf16.msra.mxu0 0
        %1124 = vmatprep.mubr.bf16.mxu0 0
        %1125 = vmatmul.mubr.bf16.gmra.mxu0 %v882
        %v1126 = vpop.f32.mrf.mxu0
        %v1127 = vadd.f32 %v827, %v1126
        %v1128 = vpop.f32.mrf.mxu0
        %v1129 = vpop.f32.mrf.mxu0
        %v1130 = vpop.f32.mrf.mxu0
        %1131 = vdwg.mxu0
        %v1136 = vunpack.c.l.b16 %v756
        %v1137 = vunpack.c.l.b16 %v757
        %v1138 = vunpack.c.l.b16 %v758
        %v1139 = vunpack.c.l.b16 %v759
        %v1140 = vpack.c.b16 %v1137, %v1136
        %v1141 = vpack.c.b16 %v1139, %v1138
        %1144 = vmatprep.subr.bf16.mxu0 0
        %1145 = vmatpush1.bf16.msra.mxu0 0
        %1146 = vmatprep.subr.bf16.mxu0 0
        %1147 = vmatpush1.bf16.msra.mxu0 0
        %1148 = vmatprep.subr.bf16.mxu0 0
        %1149 = vmatpush1.bf16.msra.mxu0 0
        %1150 = vmatprep.subr.bf16.mxu0 0
        %1151 = vmatpush1.bf16.msra.mxu0 0
        %1152 = vmatprep.subr.bf16.mxu0 0
        %1153 = vmatpush1.bf16.msra.mxu0 0
        %1154 = vmatprep.subr.bf16.mxu0 0
        %1155 = vmatpush1.bf16.msra.mxu0 0
        %1156 = vmatprep.subr.bf16.mxu0 0
        %1157 = vmatpush1.bf16.msra.mxu0 %v1141
        %1158 = vmatprep.subr.bf16.mxu0 0
        %1159 = vmatpush1.bf16.msra.mxu0 %v1140
        %1160 = vmatprep.subr.bf16.mxu0 0
        %1161 = vmatpush2.bf16.msra.mxu0 0
        %1162 = vmatprep.subr.bf16.mxu0 0
        %1163 = vmatpush2.bf16.msra.mxu0 0
        %1164 = vmatprep.subr.bf16.mxu0 0
        %1165 = vmatpush2.bf16.msra.mxu0 0
        %1166 = vmatprep.subr.bf16.mxu0 0
        %1167 = vmatpush2.bf16.msra.mxu0 0
        %1168 = vmatprep.subr.bf16.mxu0 0
        %1169 = vmatpush2.bf16.msra.mxu0 0
        %1170 = vmatprep.subr.bf16.mxu0 0
        %1171 = vmatpush2.bf16.msra.mxu0 0
        %1172 = vmatprep.subr.bf16.mxu0 0
        %1173 = vmatpush2.bf16.msra.mxu0 0
        %1174 = vmatprep.subr.bf16.mxu0 0
        %1175 = vmatpush2.bf16.msra.mxu0 0
        %1176 = vmatprep.mubr.bf16.mxu0 0
        %1177 = vmatmul.mubr.bf16.gmra.mxu0 %v882
        %v1178 = vpop.f32.mrf.mxu0
        %v1179 = vadd.f32 %v831, %v1178
        %v1180 = vpop.f32.mrf.mxu0
        %v1181 = vpop.f32.mrf.mxu0
        %v1182 = vpop.f32.mrf.mxu0
        %1183 = vdwg.mxu0
        %v1188 = vunpack.c.l.b16 %v760
        %v1189 = vunpack.c.l.b16 %v761
        %v1190 = vunpack.c.l.b16 %v762
        %v1191 = vunpack.c.l.b16 %v763
        %v1192 = vpack.c.b16 %v1189, %v1188
        %v1193 = vpack.c.b16 %v1191, %v1190
        %1196 = vmatprep.subr.bf16.mxu0 0
        %1197 = vmatpush1.bf16.msra.mxu0 0
        %1198 = vmatprep.subr.bf16.mxu0 0
        %1199 = vmatpush1.bf16.msra.mxu0 0
        %1200 = vmatprep.subr.bf16.mxu0 0
        %1201 = vmatpush1.bf16.msra.mxu0 0
        %1202 = vmatprep.subr.bf16.mxu0 0
        %1203 = vmatpush1.bf16.msra.mxu0 0
        %1204 = vmatprep.subr.bf16.mxu0 0
        %1205 = vmatpush1.bf16.msra.mxu0 0
        %1206 = vmatprep.subr.bf16.mxu0 0
        %1207 = vmatpush1.bf16.msra.mxu0 0
        %1208 = vmatprep.subr.bf16.mxu0 0
        %1209 = vmatpush1.bf16.msra.mxu0 %v1193
        %1210 = vmatprep.subr.bf16.mxu0 0
        %1211 = vmatpush1.bf16.msra.mxu0 %v1192
        %1212 = vmatprep.subr.bf16.mxu0 0
        %1213 = vmatpush2.bf16.msra.mxu0 0
        %1214 = vmatprep.subr.bf16.mxu0 0
        %1215 = vmatpush2.bf16.msra.mxu0 0
        %1216 = vmatprep.subr.bf16.mxu0 0
        %1217 = vmatpush2.bf16.msra.mxu0 0
        %1218 = vmatprep.subr.bf16.mxu0 0
        %1219 = vmatpush2.bf16.msra.mxu0 0
        %1220 = vmatprep.subr.bf16.mxu0 0
        %1221 = vmatpush2.bf16.msra.mxu0 0
        %1222 = vmatprep.subr.bf16.mxu0 0
        %1223 = vmatpush2.bf16.msra.mxu0 0
        %1224 = vmatprep.subr.bf16.mxu0 0
        %1225 = vmatpush2.bf16.msra.mxu0 0
        %1226 = vmatprep.subr.bf16.mxu0 0
        %1227 = vmatpush2.bf16.msra.mxu0 0
        %1228 = vmatprep.mubr.bf16.mxu0 0
        %1229 = vmatmul.mubr.bf16.gmra.mxu0 %v882
        %v1230 = vpop.f32.mrf.mxu0
        %v1231 = vadd.f32 %v835, %v1230
        %v1232 = vpop.f32.mrf.mxu0
        %v1233 = vpop.f32.mrf.mxu0
        %v1234 = vpop.f32.mrf.mxu0
        %1235 = vdwg.mxu0
        %v1240 = vunpack.c.l.b16 %v764
        %v1241 = vunpack.c.l.b16 %v765
        %v1242 = vunpack.c.l.b16 %v766
        %v1243 = vunpack.c.l.b16 %v767
        %v1244 = vpack.c.b16 %v1241, %v1240
        %v1245 = vpack.c.b16 %v1243, %v1242
        %1248 = vmatprep.subr.bf16.mxu0 0
        %1249 = vmatpush1.bf16.msra.mxu0 0
        %1250 = vmatprep.subr.bf16.mxu0 0
        %1251 = vmatpush1.bf16.msra.mxu0 0
        %1252 = vmatprep.subr.bf16.mxu0 0
        %1253 = vmatpush1.bf16.msra.mxu0 0
        %1254 = vmatprep.subr.bf16.mxu0 0
        %1255 = vmatpush1.bf16.msra.mxu0 0
        %1256 = vmatprep.subr.bf16.mxu0 0
        %1257 = vmatpush1.bf16.msra.mxu0 0
        %1258 = vmatprep.subr.bf16.mxu0 0
        %1259 = vmatpush1.bf16.msra.mxu0 0
        %1260 = vmatprep.subr.bf16.mxu0 0
        %1261 = vmatpush1.bf16.msra.mxu0 %v1245
        %1262 = vmatprep.subr.bf16.mxu0 0
        %1263 = vmatpush1.bf16.msra.mxu0 %v1244
        %1264 = vmatprep.subr.bf16.mxu0 0
        %1265 = vmatpush2.bf16.msra.mxu0 0
        %1266 = vmatprep.subr.bf16.mxu0 0
        %1267 = vmatpush2.bf16.msra.mxu0 0
        %1268 = vmatprep.subr.bf16.mxu0 0
        %1269 = vmatpush2.bf16.msra.mxu0 0
        %1270 = vmatprep.subr.bf16.mxu0 0
        %1271 = vmatpush2.bf16.msra.mxu0 0
        %1272 = vmatprep.subr.bf16.mxu0 0
        %1273 = vmatpush2.bf16.msra.mxu0 0
        %1274 = vmatprep.subr.bf16.mxu0 0
        %1275 = vmatpush2.bf16.msra.mxu0 0
        %1276 = vmatprep.subr.bf16.mxu0 0
        %1277 = vmatpush2.bf16.msra.mxu0 0
        %1278 = vmatprep.subr.bf16.mxu0 0
        %1279 = vmatpush2.bf16.msra.mxu0 0
        %1280 = vmatprep.mubr.bf16.mxu0 0
        %1281 = vmatmul.mubr.bf16.gmra.mxu0 %v882
        %v1282 = vpop.f32.mrf.mxu0
        %v1283 = vadd.f32 %v839, %v1282
        %v1284 = vpop.f32.mrf.mxu0
        %v1285 = vpop.f32.mrf.mxu0
        %v1286 = vpop.f32.mrf.mxu0
        %1287 = vdwg.mxu0
        %v1292 = vunpack.c.l.b16 %v768
        %v1293 = vunpack.c.l.b16 %v769
        %v1294 = vunpack.c.l.b16 %v770
        %v1295 = vunpack.c.l.b16 %v771
        %v1296 = vpack.c.b16 %v1293, %v1292
        %v1297 = vpack.c.b16 %v1295, %v1294
        %1300 = vmatprep.subr.bf16.mxu0 0
        %1301 = vmatpush1.bf16.msra.mxu0 0
        %1302 = vmatprep.subr.bf16.mxu0 0
        %1303 = vmatpush1.bf16.msra.mxu0 0
        %1304 = vmatprep.subr.bf16.mxu0 0
        %1305 = vmatpush1.bf16.msra.mxu0 0
        %1306 = vmatprep.subr.bf16.mxu0 0
        %1307 = vmatpush1.bf16.msra.mxu0 0
        %1308 = vmatprep.subr.bf16.mxu0 0
        %1309 = vmatpush1.bf16.msra.mxu0 0
        %1310 = vmatprep.subr.bf16.mxu0 0
        %1311 = vmatpush1.bf16.msra.mxu0 0
        %1312 = vmatprep.subr.bf16.mxu0 0
        %1313 = vmatpush1.bf16.msra.mxu0 %v1297
        %1314 = vmatprep.subr.bf16.mxu0 0
        %1315 = vmatpush1.bf16.msra.mxu0 %v1296
        %1316 = vmatprep.subr.bf16.mxu0 0
        %1317 = vmatpush2.bf16.msra.mxu0 0
        %1318 = vmatprep.subr.bf16.mxu0 0
        %1319 = vmatpush2.bf16.msra.mxu0 0
        %1320 = vmatprep.subr.bf16.mxu0 0
        %1321 = vmatpush2.bf16.msra.mxu0 0
        %1322 = vmatprep.subr.bf16.mxu0 0
        %1323 = vmatpush2.bf16.msra.mxu0 0
        %1324 = vmatprep.subr.bf16.mxu0 0
        %1325 = vmatpush2.bf16.msra.mxu0 0
        %1326 = vmatprep.subr.bf16.mxu0 0
        %1327 = vmatpush2.bf16.msra.mxu0 0
        %1328 = vmatprep.subr.bf16.mxu0 0
        %1329 = vmatpush2.bf16.msra.mxu0 0
        %1330 = vmatprep.subr.bf16.mxu0 0
        %1331 = vmatpush2.bf16.msra.mxu0 0
        %1332 = vmatprep.mubr.bf16.mxu0 0
        %1333 = vmatmul.mubr.bf16.gmra.mxu0 %v882
        %v1334 = vpop.f32.mrf.mxu0
        %v1335 = vadd.f32 %v843, %v1334
        %v1336 = vpop.f32.mrf.mxu0
        %v1337 = vpop.f32.mrf.mxu0
        %v1338 = vpop.f32.mrf.mxu0
        %1339 = vdwg.mxu0
        %v1344 = vunpack.c.l.b16 %v772
        %v1345 = vunpack.c.l.b16 %v773
        %v1346 = vunpack.c.l.b16 %v774
        %v1347 = vunpack.c.l.b16 %v775
        %v1348 = vpack.c.b16 %v1345, %v1344
        %v1349 = vpack.c.b16 %v1347, %v1346
        %1352 = vmatprep.subr.bf16.mxu0 0
        %1353 = vmatpush1.bf16.msra.mxu0 0
        %1354 = vmatprep.subr.bf16.mxu0 0
        %1355 = vmatpush1.bf16.msra.mxu0 0
        %1356 = vmatprep.subr.bf16.mxu0 0
        %1357 = vmatpush1.bf16.msra.mxu0 0
        %1358 = vmatprep.subr.bf16.mxu0 0
        %1359 = vmatpush1.bf16.msra.mxu0 0
        %1360 = vmatprep.subr.bf16.mxu0 0
        %1361 = vmatpush1.bf16.msra.mxu0 0
        %1362 = vmatprep.subr.bf16.mxu0 0
        %1363 = vmatpush1.bf16.msra.mxu0 0
        %1364 = vmatprep.subr.bf16.mxu0 0
        %1365 = vmatpush1.bf16.msra.mxu0 %v1349
        %1366 = vmatprep.subr.bf16.mxu0 0
        %1367 = vmatpush1.bf16.msra.mxu0 %v1348
        %1368 = vmatprep.subr.bf16.mxu0 0
        %1369 = vmatpush2.bf16.msra.mxu0 0
        %1370 = vmatprep.subr.bf16.mxu0 0
        %1371 = vmatpush2.bf16.msra.mxu0 0
        %1372 = vmatprep.subr.bf16.mxu0 0
        %1373 = vmatpush2.bf16.msra.mxu0 0
        %1374 = vmatprep.subr.bf16.mxu0 0
        %1375 = vmatpush2.bf16.msra.mxu0 0
        %1376 = vmatprep.subr.bf16.mxu0 0
        %1377 = vmatpush2.bf16.msra.mxu0 0
        %1378 = vmatprep.subr.bf16.mxu0 0
        %1379 = vmatpush2.bf16.msra.mxu0 0
        %1380 = vmatprep.subr.bf16.mxu0 0
        %1381 = vmatpush2.bf16.msra.mxu0 0
        %1382 = vmatprep.subr.bf16.mxu0 0
        %1383 = vmatpush2.bf16.msra.mxu0 0
        %1384 = vmatprep.mubr.bf16.mxu0 0
        %1385 = vmatmul.mubr.bf16.gmra.mxu0 %v882
        %v1386 = vpop.f32.mrf.mxu0
        %v1387 = vadd.f32 %v847, %v1386
        %v1388 = vpop.f32.mrf.mxu0
        %v1389 = vpop.f32.mrf.mxu0
        %v1390 = vpop.f32.mrf.mxu0
        %1391 = vdwg.mxu0
        %v1396 = vunpack.c.l.b16 %v776
        %v1397 = vunpack.c.l.b16 %v777
        %v1398 = vunpack.c.l.b16 %v778
        %v1399 = vunpack.c.l.b16 %v779
        %v1400 = vpack.c.b16 %v1397, %v1396
        %v1401 = vpack.c.b16 %v1399, %v1398
        %1404 = vmatprep.subr.bf16.mxu0 0
        %1405 = vmatpush1.bf16.msra.mxu0 0
        %1406 = vmatprep.subr.bf16.mxu0 0
        %1407 = vmatpush1.bf16.msra.mxu0 0
        %1408 = vmatprep.subr.bf16.mxu0 0
        %1409 = vmatpush1.bf16.msra.mxu0 0
        %1410 = vmatprep.subr.bf16.mxu0 0
        %1411 = vmatpush1.bf16.msra.mxu0 0
        %1412 = vmatprep.subr.bf16.mxu0 0
        %1413 = vmatpush1.bf16.msra.mxu0 0
        %1414 = vmatprep.subr.bf16.mxu0 0
        %1415 = vmatpush1.bf16.msra.mxu0 0
        %1416 = vmatprep.subr.bf16.mxu0 0
        %1417 = vmatpush1.bf16.msra.mxu0 %v1401
        %1418 = vmatprep.subr.bf16.mxu0 0
        %1419 = vmatpush1.bf16.msra.mxu0 %v1400
        %1420 = vmatprep.subr.bf16.mxu0 0
        %1421 = vmatpush2.bf16.msra.mxu0 0
        %1422 = vmatprep.subr.bf16.mxu0 0
        %1423 = vmatpush2.bf16.msra.mxu0 0
        %1424 = vmatprep.subr.bf16.mxu0 0
        %1425 = vmatpush2.bf16.msra.mxu0 0
        %1426 = vmatprep.subr.bf16.mxu0 0
        %1427 = vmatpush2.bf16.msra.mxu0 0
        %1428 = vmatprep.subr.bf16.mxu0 0
        %1429 = vmatpush2.bf16.msra.mxu0 0
        %1430 = vmatprep.subr.bf16.mxu0 0
        %1431 = vmatpush2.bf16.msra.mxu0 0
        %1432 = vmatprep.subr.bf16.mxu0 0
        %1433 = vmatpush2.bf16.msra.mxu0 0
        %1434 = vmatprep.subr.bf16.mxu0 0
        %1435 = vmatpush2.bf16.msra.mxu0 0
        %1436 = vmatprep.mubr.bf16.mxu0 0
        %1437 = vmatmul.mubr.bf16.gmra.mxu0 %v882
        %v1438 = vpop.f32.mrf.mxu0
        %v1439 = vadd.f32 %v851, %v1438
        %v1440 = vpop.f32.mrf.mxu0
        %v1441 = vpop.f32.mrf.mxu0
        %v1442 = vpop.f32.mrf.mxu0
        %1443 = vdwg.mxu0
        %v1448 = vunpack.c.l.b16 %v780
        %v1449 = vunpack.c.l.b16 %v781
        %v1450 = vunpack.c.l.b16 %v782
        %v1451 = vunpack.c.l.b16 %v783
        %v1452 = vpack.c.b16 %v1449, %v1448
        %v1453 = vpack.c.b16 %v1451, %v1450
        %1456 = vmatprep.subr.bf16.mxu0 0
        %1457 = vmatpush1.bf16.msra.mxu0 0
        %1458 = vmatprep.subr.bf16.mxu0 0
        %1459 = vmatpush1.bf16.msra.mxu0 0
        %1460 = vmatprep.subr.bf16.mxu0 0
        %1461 = vmatpush1.bf16.msra.mxu0 0
        %1462 = vmatprep.subr.bf16.mxu0 0
        %1463 = vmatpush1.bf16.msra.mxu0 0
        %1464 = vmatprep.subr.bf16.mxu0 0
        %1465 = vmatpush1.bf16.msra.mxu0 0
        %1466 = vmatprep.subr.bf16.mxu0 0
        %1467 = vmatpush1.bf16.msra.mxu0 0
        %1468 = vmatprep.subr.bf16.mxu0 0
        %1469 = vmatpush1.bf16.msra.mxu0 %v1453
        %1470 = vmatprep.subr.bf16.mxu0 0
        %1471 = vmatpush1.bf16.msra.mxu0 %v1452
        %1472 = vmatprep.subr.bf16.mxu0 0
        %1473 = vmatpush2.bf16.msra.mxu0 0
        %1474 = vmatprep.subr.bf16.mxu0 0
        %1475 = vmatpush2.bf16.msra.mxu0 0
        %1476 = vmatprep.subr.bf16.mxu0 0
        %1477 = vmatpush2.bf16.msra.mxu0 0
        %1478 = vmatprep.subr.bf16.mxu0 0
        %1479 = vmatpush2.bf16.msra.mxu0 0
        %1480 = vmatprep.subr.bf16.mxu0 0
        %1481 = vmatpush2.bf16.msra.mxu0 0
        %1482 = vmatprep.subr.bf16.mxu0 0
        %1483 = vmatpush2.bf16.msra.mxu0 0
        %1484 = vmatprep.subr.bf16.mxu0 0
        %1485 = vmatpush2.bf16.msra.mxu0 0
        %1486 = vmatprep.subr.bf16.mxu0 0
        %1487 = vmatpush2.bf16.msra.mxu0 0
        %1488 = vmatprep.mubr.bf16.mxu0 0
        %1489 = vmatmul.mubr.bf16.gmra.mxu0 %v882
        %v1490 = vpop.f32.mrf.mxu0
        %v1491 = vadd.f32 %v855, %v1490
        %v1492 = vpop.f32.mrf.mxu0
        %v1493 = vpop.f32.mrf.mxu0
        %v1494 = vpop.f32.mrf.mxu0
        %1495 = vdwg.mxu0
        %v1496 = vlaneseq
        %v1497 = vshrl.u32 %v1496, 7
        %v1498 = vlaneseq
        %v1499 = vand.u32 %v1498, 127
        %vm1500 = vcmp.le.s32.totalorder %v1499, %v1497
        %v1501 = vpack.c.bf16 %v919, %v919
        %v1502 = vpack.c.bf16 %v971, %v971
        %v1503 = vpack.c.bf16 %v1023, %v1023
        %v1504 = vpack.c.bf16 %v1075, %v1075
        %v1505 = vpack.c.bf16 %v1127, %v1127
        %v1506 = vpack.c.bf16 %v1179, %v1179
        %v1507 = vpack.c.bf16 %v1231, %v1231
        %v1508 = vpack.c.bf16 %v1283, %v1283
        %vm1509 = vcmask 64512
        %v1511 = vsel %vm1509, %v1501, 0
        %v1514 = vsel %vm1509, %v1505, 0
        %1516 = vmatprep.subr.bf16.mxu0 0
        %1517 = vmatpush1.bf16.xpose.msra.mxu0 0
        %1518 = vmatprep.subr.bf16.mxu0 0
        %1519 = vmatpush1.bf16.xpose.msra.mxu0 0
        %1520 = vmatprep.subr.bf16.mxu0 0
        %1521 = vmatpush1.bf16.xpose.msra.mxu0 0
        %1522 = vmatprep.subr.bf16.mxu0 0
        %1523 = vmatpush1.bf16.xpose.msra.mxu0 0
        %1524 = vmatprep.subr.bf16.mxu0 0
        %1525 = vmatpush1.bf16.xpose.msra.mxu0 0
        %1526 = vmatprep.subr.bf16.mxu0 0
        %1527 = vmatpush1.bf16.xpose.msra.mxu0 0
        %1528 = vmatprep.subr.bf16.mxu0 0
        %1529 = vmatpush1.bf16.xpose.msra.mxu0 0
        %1530 = vmatprep.subr.bf16.mxu0 0
        %1531 = vmatpush1.bf16.xpose.msra.mxu0 %v1514
        %1532 = vmatprep.subr.bf16.mxu0 0
        %1533 = vmatpush2.bf16.xpose.msra.mxu0 0
        %1534 = vmatprep.subr.bf16.mxu0 0
        %1535 = vmatpush2.bf16.xpose.msra.mxu0 0
        %1536 = vmatprep.subr.bf16.mxu0 0
        %1537 = vmatpush2.bf16.xpose.msra.mxu0 0
        %1538 = vmatprep.subr.bf16.mxu0 0
        %1539 = vmatpush2.bf16.xpose.msra.mxu0 0
        %1540 = vmatprep.subr.bf16.mxu0 0
        %1541 = vmatpush2.bf16.xpose.msra.mxu0 0
        %1542 = vmatprep.subr.bf16.mxu0 0
        %1543 = vmatpush2.bf16.xpose.msra.mxu0 0
        %1544 = vmatprep.subr.bf16.mxu0 0
        %1545 = vmatpush2.bf16.xpose.msra.mxu0 0
        %1546 = vmatprep.subr.bf16.mxu0 0
        %1547 = vmatpush2.bf16.xpose.msra.mxu0 0
        %1548 = vmatprep.mubr.bf16.mxu0 0
        %1549 = vmatmul.mubr.bf16.gmra.mxu0 %v1511
        %v1550 = vpop.f32.mrf.mxu0
        %v1551 = vadd.f32 0.0, %v1550
        %v1552 = vpop.f32.mrf.mxu0
        %v1553 = vpop.f32.mrf.mxu0
        %v1554 = vpop.f32.mrf.mxu0
        %1555 = vdwg.mxu0
        %v1557 = vsel %vm1509, %v1502, 0
        %v1560 = vsel %vm1509, %v1506, 0
        %1562 = vmatprep.subr.bf16.mxu0 0
        %1563 = vmatpush1.bf16.xpose.msra.mxu0 0
        %1564 = vmatprep.subr.bf16.mxu0 0
        %1565 = vmatpush1.bf16.xpose.msra.mxu0 0
        %1566 = vmatprep.subr.bf16.mxu0 0
        %1567 = vmatpush1.bf16.xpose.msra.mxu0 0
        %1568 = vmatprep.subr.bf16.mxu0 0
        %1569 = vmatpush1.bf16.xpose.msra.mxu0 0
        %1570 = vmatprep.subr.bf16.mxu0 0
        %1571 = vmatpush1.bf16.xpose.msra.mxu0 0
        %1572 = vmatprep.subr.bf16.mxu0 0
        %1573 = vmatpush1.bf16.xpose.msra.mxu0 0
        %1574 = vmatprep.subr.bf16.mxu0 0
        %1575 = vmatpush1.bf16.xpose.msra.mxu0 0
        %1576 = vmatprep.subr.bf16.mxu0 0
        %1577 = vmatpush1.bf16.xpose.msra.mxu0 %v1560
        %1578 = vmatprep.subr.bf16.mxu0 0
        %1579 = vmatpush2.bf16.xpose.msra.mxu0 0
        %1580 = vmatprep.subr.bf16.mxu0 0
        %1581 = vmatpush2.bf16.xpose.msra.mxu0 0
        %1582 = vmatprep.subr.bf16.mxu0 0
        %1583 = vmatpush2.bf16.xpose.msra.mxu0 0
        %1584 = vmatprep.subr.bf16.mxu0 0
        %1585 = vmatpush2.bf16.xpose.msra.mxu0 0
        %1586 = vmatprep.subr.bf16.mxu0 0
        %1587 = vmatpush2.bf16.xpose.msra.mxu0 0
        %1588 = vmatprep.subr.bf16.mxu0 0
        %1589 = vmatpush2.bf16.xpose.msra.mxu0 0
        %1590 = vmatprep.subr.bf16.mxu0 0
        %1591 = vmatpush2.bf16.xpose.msra.mxu0 0
        %1592 = vmatprep.subr.bf16.mxu0 0
        %1593 = vmatpush2.bf16.xpose.msra.mxu0 0
        %1594 = vmatprep.mubr.bf16.mxu0 0
        %1595 = vmatmul.mubr.bf16.gmra.mxu0 %v1557
        %v1596 = vpop.f32.mrf.mxu0
        %v1597 = vadd.f32 0.0, %v1596
        %v1598 = vpop.f32.mrf.mxu0
        %v1599 = vpop.f32.mrf.mxu0
        %v1600 = vpop.f32.mrf.mxu0
        %1601 = vdwg.mxu0
        %v1603 = vsel %vm1509, %v1503, 0
        %v1606 = vsel %vm1509, %v1507, 0
        %1608 = vmatprep.subr.bf16.mxu0 0
        %1609 = vmatpush1.bf16.xpose.msra.mxu0 0
        %1610 = vmatprep.subr.bf16.mxu0 0
        %1611 = vmatpush1.bf16.xpose.msra.mxu0 0
        %1612 = vmatprep.subr.bf16.mxu0 0
        %1613 = vmatpush1.bf16.xpose.msra.mxu0 0
        %1614 = vmatprep.subr.bf16.mxu0 0
        %1615 = vmatpush1.bf16.xpose.msra.mxu0 0
        %1616 = vmatprep.subr.bf16.mxu0 0
        %1617 = vmatpush1.bf16.xpose.msra.mxu0 0
        %1618 = vmatprep.subr.bf16.mxu0 0
        %1619 = vmatpush1.bf16.xpose.msra.mxu0 0
        %1620 = vmatprep.subr.bf16.mxu0 0
        %1621 = vmatpush1.bf16.xpose.msra.mxu0 0
        %1622 = vmatprep.subr.bf16.mxu0 0
        %1623 = vmatpush1.bf16.xpose.msra.mxu0 %v1606
        %1624 = vmatprep.subr.bf16.mxu0 0
        %1625 = vmatpush2.bf16.xpose.msra.mxu0 0
        %1626 = vmatprep.subr.bf16.mxu0 0
        %1627 = vmatpush2.bf16.xpose.msra.mxu0 0
        %1628 = vmatprep.subr.bf16.mxu0 0
        %1629 = vmatpush2.bf16.xpose.msra.mxu0 0
        %1630 = vmatprep.subr.bf16.mxu0 0
        %1631 = vmatpush2.bf16.xpose.msra.mxu0 0
        %1632 = vmatprep.subr.bf16.mxu0 0
        %1633 = vmatpush2.bf16.xpose.msra.mxu0 0
        %1634 = vmatprep.subr.bf16.mxu0 0
        %1635 = vmatpush2.bf16.xpose.msra.mxu0 0
        %1636 = vmatprep.subr.bf16.mxu0 0
        %1637 = vmatpush2.bf16.xpose.msra.mxu0 0
        %1638 = vmatprep.subr.bf16.mxu0 0
        %1639 = vmatpush2.bf16.xpose.msra.mxu0 0
        %1640 = vmatprep.mubr.bf16.mxu0 0
        %1641 = vmatmul.mubr.bf16.gmra.mxu0 %v1603
        %v1642 = vpop.f32.mrf.mxu0
        %v1643 = vadd.f32 0.0, %v1642
        %v1644 = vpop.f32.mrf.mxu0
        %v1645 = vpop.f32.mrf.mxu0
        %v1646 = vpop.f32.mrf.mxu0
        %1647 = vdwg.mxu0
        %v1649 = vsel %vm1509, %v1504, 0
        %v1652 = vsel %vm1509, %v1508, 0
        %1654 = vmatprep.subr.bf16.mxu0 0
        %1655 = vmatpush1.bf16.xpose.msra.mxu0 0
        %1656 = vmatprep.subr.bf16.mxu0 0
        %1657 = vmatpush1.bf16.xpose.msra.mxu0 0
        %1658 = vmatprep.subr.bf16.mxu0 0
        %1659 = vmatpush1.bf16.xpose.msra.mxu0 0
        %1660 = vmatprep.subr.bf16.mxu0 0
        %1661 = vmatpush1.bf16.xpose.msra.mxu0 0
        %1662 = vmatprep.subr.bf16.mxu0 0
        %1663 = vmatpush1.bf16.xpose.msra.mxu0 0
        %1664 = vmatprep.subr.bf16.mxu0 0
        %1665 = vmatpush1.bf16.xpose.msra.mxu0 0
        %1666 = vmatprep.subr.bf16.mxu0 0
        %1667 = vmatpush1.bf16.xpose.msra.mxu0 0
        %1668 = vmatprep.subr.bf16.mxu0 0
        %1669 = vmatpush1.bf16.xpose.msra.mxu0 %v1652
        %1670 = vmatprep.subr.bf16.mxu0 0
        %1671 = vmatpush2.bf16.xpose.msra.mxu0 0
        %1672 = vmatprep.subr.bf16.mxu0 0
        %1673 = vmatpush2.bf16.xpose.msra.mxu0 0
        %1674 = vmatprep.subr.bf16.mxu0 0
        %1675 = vmatpush2.bf16.xpose.msra.mxu0 0
        %1676 = vmatprep.subr.bf16.mxu0 0
        %1677 = vmatpush2.bf16.xpose.msra.mxu0 0
        %1678 = vmatprep.subr.bf16.mxu0 0
        %1679 = vmatpush2.bf16.xpose.msra.mxu0 0
        %1680 = vmatprep.subr.bf16.mxu0 0
        %1681 = vmatpush2.bf16.xpose.msra.mxu0 0
        %1682 = vmatprep.subr.bf16.mxu0 0
        %1683 = vmatpush2.bf16.xpose.msra.mxu0 0
        %1684 = vmatprep.subr.bf16.mxu0 0
        %1685 = vmatpush2.bf16.xpose.msra.mxu0 0
        %1686 = vmatprep.mubr.bf16.mxu0 0
        %1687 = vmatmul.mubr.bf16.gmra.mxu0 %v1649
        %v1688 = vpop.f32.mrf.mxu0
        %v1689 = vadd.f32 0.0, %v1688
        %v1690 = vpop.f32.mrf.mxu0
        %v1691 = vpop.f32.mrf.mxu0
        %v1692 = vpop.f32.mrf.mxu0
        %1693 = vdwg.mxu0
        %v1694 = vsel %vm1500, 1, 0
        %vm1695 = vcmp.eq.s32.totalorder %v1694, 1
        %v1696 = vsel %vm1695, %v1551, -1e+30
        %v1697 = vsel %vm1695, %v1597, -1e+30
        %v1698 = vsel %vm1695, %v1643, -1e+30
        %v1699 = vsel %vm1695, %v1689, -1e+30
        %v1700 = vsel %vm1509, %v1696, -inf
        %1701 = vmax.xlane.f32.xlu0 %v1700
        %v1702 = vpop.xlane.xlu0 %1701
        %v1703 = vsel %vm1509, %v1697, -inf
        %1704 = vmax.xlane.f32.xlu0 %v1703
        %v1705 = vpop.xlane.xlu0 %1704
        %v1706 = vsel %vm1509, %v1698, -inf
        %1707 = vmax.xlane.f32.xlu0 %v1706
        %v1708 = vpop.xlane.xlu0 %1707
        %v1709 = vsel %vm1509, %v1699, -inf
        %1710 = vmax.xlane.f32.xlu0 %v1709
        %v1711 = vpop.xlane.xlu0 %1710
        %v1712 = vsub.f32 %v1696, %v1702
        %v1713 = vsub.f32 %v1697, %v1705
        %v1714 = vsub.f32 %v1698, %v1708
        %v1715 = vsub.f32 %v1699, %v1711
        %v1716 = vmul.f32 %v1712, 1.442695
        %v1717 = vpow.pop %v1716
        %v1718 = vmul.f32 %v1713, 1.442695
        %v1719 = vpow.pop %v1718
        %v1720 = vmul.f32 %v1714, 1.442695
        %v1721 = vpow.pop %v1720
        %v1722 = vmul.f32 %v1715, 1.442695
        %v1723 = vpow.pop %v1722
        %v1724 = vsel %vm1509, %v1717, 0.0
        %1725 = vadd.xlane.f32.xlu0 %v1724
        %v1726 = vpop.xlane.xlu0 %1725
        %v1727 = vsel %vm1509, %v1719, 0.0
        %1728 = vadd.xlane.f32.xlu0 %v1727
        %v1729 = vpop.xlane.xlu0 %1728
        %v1730 = vsel %vm1509, %v1721, 0.0
        %1731 = vadd.xlane.f32.xlu0 %v1730
        %v1732 = vpop.xlane.xlu0 %1731
        %v1733 = vsel %vm1509, %v1723, 0.0
        %1734 = vadd.xlane.f32.xlu0 %v1733
        %v1735 = vpop.xlane.xlu0 %1734
        %v1736 = vrcp.pop %v1726
        %v1737 = vrcp.pop %v1729
        %v1738 = vrcp.pop %v1732
        %v1739 = vrcp.pop %v1735
        %v1740 = vmul.f32 %v1717, %v1736
        %v1741 = vmul.f32 %v1719, %v1737
        %v1742 = vmul.f32 %v1721, %v1738
        %v1743 = vmul.f32 %v1723, %v1739
        %v1744 = vpack.c.bf16 %v1740, %v1740
        %v1745 = vpack.c.bf16 %v1741, %v1741
        %v1746 = vpack.c.bf16 %v1742, %v1742
        %v1747 = vpack.c.bf16 %v1743, %v1743
        %v1748 = vpack.c.bf16 %v1335, %v1335
        %v1749 = vpack.c.bf16 %v1387, %v1387
        %v1750 = vpack.c.bf16 %v1439, %v1439
        %v1751 = vpack.c.bf16 %v1491, %v1491
        %v1753 = vsel %vm1509, %v1744, 0
        %vm1755 = vcmask 1043456
        %v1757 = vsel %vm1755, %v1748, 0
        %1759 = vmatprep.subr.bf16.mxu0 0
        %1760 = vmatpush1.bf16.msra.mxu0 0
        %1761 = vmatprep.subr.bf16.mxu0 0
        %1762 = vmatpush1.bf16.msra.mxu0 0
        %1763 = vmatprep.subr.bf16.mxu0 0
        %1764 = vmatpush1.bf16.msra.mxu0 0
        %1765 = vmatprep.subr.bf16.mxu0 0
        %1766 = vmatpush1.bf16.msra.mxu0 0
        %1767 = vmatprep.subr.bf16.mxu0 0
        %1768 = vmatpush1.bf16.msra.mxu0 0
        %1769 = vmatprep.subr.bf16.mxu0 0
        %1770 = vmatpush1.bf16.msra.mxu0 0
        %1771 = vmatprep.subr.bf16.mxu0 0
        %1772 = vmatpush1.bf16.msra.mxu0 0
        %1773 = vmatprep.subr.bf16.mxu0 0
        %1774 = vmatpush1.bf16.msra.mxu0 %v1757
        %1775 = vmatprep.subr.bf16.mxu0 0
        %1776 = vmatpush2.bf16.msra.mxu0 0
        %1777 = vmatprep.subr.bf16.mxu0 0
        %1778 = vmatpush2.bf16.msra.mxu0 0
        %1779 = vmatprep.subr.bf16.mxu0 0
        %1780 = vmatpush2.bf16.msra.mxu0 0
        %1781 = vmatprep.subr.bf16.mxu0 0
        %1782 = vmatpush2.bf16.msra.mxu0 0
        %1783 = vmatprep.subr.bf16.mxu0 0
        %1784 = vmatpush2.bf16.msra.mxu0 0
        %1785 = vmatprep.subr.bf16.mxu0 0
        %1786 = vmatpush2.bf16.msra.mxu0 0
        %1787 = vmatprep.subr.bf16.mxu0 0
        %1788 = vmatpush2.bf16.msra.mxu0 0
        %1789 = vmatprep.subr.bf16.mxu0 0
        %1790 = vmatpush2.bf16.msra.mxu0 0
        %1791 = vmatprep.mubr.bf16.mxu0 0
        %1792 = vmatmul.mubr.bf16.gmra.mxu0 %v1753
        %v1793 = vpop.f32.mrf.mxu0
        %v1794 = vadd.f32 0.0, %v1793
        %v1795 = vpop.f32.mrf.mxu0
        %v1796 = vpop.f32.mrf.mxu0
        %v1797 = vpop.f32.mrf.mxu0
        %1798 = vdwg.mxu0
        %v1800 = vsel %vm1509, %v1745, 0
        %v1803 = vsel %vm1755, %v1749, 0
        %1805 = vmatprep.subr.bf16.mxu0 0
        %1806 = vmatpush1.bf16.msra.mxu0 0
        %1807 = vmatprep.subr.bf16.mxu0 0
        %1808 = vmatpush1.bf16.msra.mxu0 0
        %1809 = vmatprep.subr.bf16.mxu0 0
        %1810 = vmatpush1.bf16.msra.mxu0 0
        %1811 = vmatprep.subr.bf16.mxu0 0
        %1812 = vmatpush1.bf16.msra.mxu0 0
        %1813 = vmatprep.subr.bf16.mxu0 0
        %1814 = vmatpush1.bf16.msra.mxu0 0
        %1815 = vmatprep.subr.bf16.mxu0 0
        %1816 = vmatpush1.bf16.msra.mxu0 0
        %1817 = vmatprep.subr.bf16.mxu0 0
        %1818 = vmatpush1.bf16.msra.mxu0 0
        %1819 = vmatprep.subr.bf16.mxu0 0
        %1820 = vmatpush1.bf16.msra.mxu0 %v1803
        %1821 = vmatprep.subr.bf16.mxu0 0
        %1822 = vmatpush2.bf16.msra.mxu0 0
        %1823 = vmatprep.subr.bf16.mxu0 0
        %1824 = vmatpush2.bf16.msra.mxu0 0
        %1825 = vmatprep.subr.bf16.mxu0 0
        %1826 = vmatpush2.bf16.msra.mxu0 0
        %1827 = vmatprep.subr.bf16.mxu0 0
        %1828 = vmatpush2.bf16.msra.mxu0 0
        %1829 = vmatprep.subr.bf16.mxu0 0
        %1830 = vmatpush2.bf16.msra.mxu0 0
        %1831 = vmatprep.subr.bf16.mxu0 0
        %1832 = vmatpush2.bf16.msra.mxu0 0
        %1833 = vmatprep.subr.bf16.mxu0 0
        %1834 = vmatpush2.bf16.msra.mxu0 0
        %1835 = vmatprep.subr.bf16.mxu0 0
        %1836 = vmatpush2.bf16.msra.mxu0 0
        %1837 = vmatprep.mubr.bf16.mxu0 0
        %1838 = vmatmul.mubr.bf16.gmra.mxu0 %v1800
        %v1839 = vpop.f32.mrf.mxu0
        %v1840 = vadd.f32 0.0, %v1839
        %v1841 = vpop.f32.mrf.mxu0
        %v1842 = vpop.f32.mrf.mxu0
        %v1843 = vpop.f32.mrf.mxu0
        %1844 = vdwg.mxu0
        %v1846 = vsel %vm1509, %v1746, 0
        %v1849 = vsel %vm1755, %v1750, 0
        %1851 = vmatprep.subr.bf16.mxu0 0
        %1852 = vmatpush1.bf16.msra.mxu0 0
        %1853 = vmatprep.subr.bf16.mxu0 0
        %1854 = vmatpush1.bf16.msra.mxu0 0
        %1855 = vmatprep.subr.bf16.mxu0 0
        %1856 = vmatpush1.bf16.msra.mxu0 0
        %1857 = vmatprep.subr.bf16.mxu0 0
        %1858 = vmatpush1.bf16.msra.mxu0 0
        %1859 = vmatprep.subr.bf16.mxu0 0
        %1860 = vmatpush1.bf16.msra.mxu0 0
        %1861 = vmatprep.subr.bf16.mxu0 0
        %1862 = vmatpush1.bf16.msra.mxu0 0
        %1863 = vmatprep.subr.bf16.mxu0 0
        %1864 = vmatpush1.bf16.msra.mxu0 0
        %1865 = vmatprep.subr.bf16.mxu0 0
        %1866 = vmatpush1.bf16.msra.mxu0 %v1849
        %1867 = vmatprep.subr.bf16.mxu0 0
        %1868 = vmatpush2.bf16.msra.mxu0 0
        %1869 = vmatprep.subr.bf16.mxu0 0
        %1870 = vmatpush2.bf16.msra.mxu0 0
        %1871 = vmatprep.subr.bf16.mxu0 0
        %1872 = vmatpush2.bf16.msra.mxu0 0
        %1873 = vmatprep.subr.bf16.mxu0 0
        %1874 = vmatpush2.bf16.msra.mxu0 0
        %1875 = vmatprep.subr.bf16.mxu0 0
        %1876 = vmatpush2.bf16.msra.mxu0 0
        %1877 = vmatprep.subr.bf16.mxu0 0
        %1878 = vmatpush2.bf16.msra.mxu0 0
        %1879 = vmatprep.subr.bf16.mxu0 0
        %1880 = vmatpush2.bf16.msra.mxu0 0
        %1881 = vmatprep.subr.bf16.mxu0 0
        %1882 = vmatpush2.bf16.msra.mxu0 0
        %1883 = vmatprep.mubr.bf16.mxu0 0
        %1884 = vmatmul.mubr.bf16.gmra.mxu0 %v1846
        %v1885 = vpop.f32.mrf.mxu0
        %v1886 = vadd.f32 0.0, %v1885
        %v1887 = vpop.f32.mrf.mxu0
        %v1888 = vpop.f32.mrf.mxu0
        %v1889 = vpop.f32.mrf.mxu0
        %1890 = vdwg.mxu0
        %v1892 = vsel %vm1509, %v1747, 0
        %v1895 = vsel %vm1755, %v1751, 0
        %1897 = vmatprep.subr.bf16.mxu0 0
        %1898 = vmatpush1.bf16.msra.mxu0 0
        %1899 = vmatprep.subr.bf16.mxu0 0
        %1900 = vmatpush1.bf16.msra.mxu0 0
        %1901 = vmatprep.subr.bf16.mxu0 0
        %1902 = vmatpush1.bf16.msra.mxu0 0
        %1903 = vmatprep.subr.bf16.mxu0 0
        %1904 = vmatpush1.bf16.msra.mxu0 0
        %1905 = vmatprep.subr.bf16.mxu0 0
        %1906 = vmatpush1.bf16.msra.mxu0 0
        %1907 = vmatprep.subr.bf16.mxu0 0
        %1908 = vmatpush1.bf16.msra.mxu0 0
        %1909 = vmatprep.subr.bf16.mxu0 0
        %1910 = vmatpush1.bf16.msra.mxu0 0
        %1911 = vmatprep.subr.bf16.mxu0 0
        %1912 = vmatpush1.bf16.msra.mxu0 %v1895
        %1913 = vmatprep.subr.bf16.mxu0 0
        %1914 = vmatpush2.bf16.msra.mxu0 0
        %1915 = vmatprep.subr.bf16.mxu0 0
        %1916 = vmatpush2.bf16.msra.mxu0 0
        %1917 = vmatprep.subr.bf16.mxu0 0
        %1918 = vmatpush2.bf16.msra.mxu0 0
        %1919 = vmatprep.subr.bf16.mxu0 0
        %1920 = vmatpush2.bf16.msra.mxu0 0
        %1921 = vmatprep.subr.bf16.mxu0 0
        %1922 = vmatpush2.bf16.msra.mxu0 0
        %1923 = vmatprep.subr.bf16.mxu0 0
        %1924 = vmatpush2.bf16.msra.mxu0 0
        %1925 = vmatprep.subr.bf16.mxu0 0
        %1926 = vmatpush2.bf16.msra.mxu0 0
        %1927 = vmatprep.subr.bf16.mxu0 0
        %1928 = vmatpush2.bf16.msra.mxu0 0
        %1929 = vmatprep.mubr.bf16.mxu0 0
        %1930 = vmatmul.mubr.bf16.gmra.mxu0 %v1892
        %v1931 = vpop.f32.mrf.mxu0
        %v1932 = vadd.f32 0.0, %v1931
        %v1933 = vpop.f32.mrf.mxu0
        %v1934 = vpop.f32.mrf.mxu0
        %v1935 = vpop.f32.mrf.mxu0
        %1936 = vdwg.mxu0
        %v1937 = vpack.c.bf16 %v1794, %v1794
        %v1938 = vpack.c.bf16 %v1840, %v1840
        %v1939 = vpack.c.bf16 %v1886, %v1886
        %v1940 = vpack.c.bf16 %v1932, %v1932
        %v1941 = vld [vmem:[%s692] sm:$0xf]
        %v1942 = vld [vmem:[%s692 + $0x4] sm:$0xf]
        %v1943 = vld [vmem:[%s692 + $0x8] sm:$0xf]
        %v1944 = vld [vmem:[%s692 + $0xc] sm:$0xf]
        %v1946 = vsel %vm1509, %v1937, 0
        %v1949 = vsel %vm1755, %v1941, 0
        %1951 = vmatprep.subr.bf16.mxu0 0
        %1952 = vmatpush1.bf16.msra.mxu0 0
        %1953 = vmatprep.subr.bf16.mxu0 0
        %1954 = vmatpush1.bf16.msra.mxu0 0
        %1955 = vmatprep.subr.bf16.mxu0 0
        %1956 = vmatpush1.bf16.msra.mxu0 0
        %1957 = vmatprep.subr.bf16.mxu0 0
        %1958 = vmatpush1.bf16.msra.mxu0 0
        %1959 = vmatprep.subr.bf16.mxu0 0
        %1960 = vmatpush1.bf16.msra.mxu0 0
        %1961 = vmatprep.subr.bf16.mxu0 0
        %1962 = vmatpush1.bf16.msra.mxu0 0
        %1963 = vmatprep.subr.bf16.mxu0 0
        %1964 = vmatpush1.bf16.msra.mxu0 0
        %1965 = vmatprep.subr.bf16.mxu0 0
        %1966 = vmatpush1.bf16.msra.mxu0 %v1949
        %1967 = vmatprep.subr.bf16.mxu0 0
        %1968 = vmatpush2.bf16.msra.mxu0 0
        %1969 = vmatprep.subr.bf16.mxu0 0
        %1970 = vmatpush2.bf16.msra.mxu0 0
        %1971 = vmatprep.subr.bf16.mxu0 0
        %1972 = vmatpush2.bf16.msra.mxu0 0
        %1973 = vmatprep.subr.bf16.mxu0 0
        %1974 = vmatpush2.bf16.msra.mxu0 0
        %1975 = vmatprep.subr.bf16.mxu0 0
        %1976 = vmatpush2.bf16.msra.mxu0 0
        %1977 = vmatprep.subr.bf16.mxu0 0
        %1978 = vmatpush2.bf16.msra.mxu0 0
        %1979 = vmatprep.subr.bf16.mxu0 0
        %1980 = vmatpush2.bf16.msra.mxu0 0
        %1981 = vmatprep.subr.bf16.mxu0 0
        %1982 = vmatpush2.bf16.msra.mxu0 0
        %1983 = vmatprep.mubr.bf16.mxu0 0
        %1984 = vmatmul.mubr.bf16.gmra.mxu0 %v1946
        %v1985 = vpop.f32.mrf.mxu0
        %v1986 = vadd.f32 0.0, %v1985
        %v1987 = vpop.f32.mrf.mxu0
        %v1988 = vpop.f32.mrf.mxu0
        %v1989 = vpop.f32.mrf.mxu0
        %1990 = vdwg.mxu0
        %v1992 = vsel %vm1509, %v1938, 0
        %v1995 = vsel %vm1755, %v1942, 0
        %1997 = vmatprep.subr.bf16.mxu0 0
        %1998 = vmatpush1.bf16.msra.mxu0 0
        %1999 = vmatprep.subr.bf16.mxu0 0
        %2000 = vmatpush1.bf16.msra.mxu0 0
        %2001 = vmatprep.subr.bf16.mxu0 0
        %2002 = vmatpush1.bf16.msra.mxu0 0
        %2003 = vmatprep.subr.bf16.mxu0 0
        %2004 = vmatpush1.bf16.msra.mxu0 0
        %2005 = vmatprep.subr.bf16.mxu0 0
        %2006 = vmatpush1.bf16.msra.mxu0 0
        %2007 = vmatprep.subr.bf16.mxu0 0
        %2008 = vmatpush1.bf16.msra.mxu0 0
        %2009 = vmatprep.subr.bf16.mxu0 0
        %2010 = vmatpush1.bf16.msra.mxu0 0
        %2011 = vmatprep.subr.bf16.mxu0 0
        %2012 = vmatpush1.bf16.msra.mxu0 %v1995
        %2013 = vmatprep.subr.bf16.mxu0 0
        %2014 = vmatpush2.bf16.msra.mxu0 0
        %2015 = vmatprep.subr.bf16.mxu0 0
        %2016 = vmatpush2.bf16.msra.mxu0 0
        %2017 = vmatprep.subr.bf16.mxu0 0
        %2018 = vmatpush2.bf16.msra.mxu0 0
        %2019 = vmatprep.subr.bf16.mxu0 0
        %2020 = vmatpush2.bf16.msra.mxu0 0
        %2021 = vmatprep.subr.bf16.mxu0 0
        %2022 = vmatpush2.bf16.msra.mxu0 0
        %2023 = vmatprep.subr.bf16.mxu0 0
        %2024 = vmatpush2.bf16.msra.mxu0 0
        %2025 = vmatprep.subr.bf16.mxu0 0
        %2026 = vmatpush2.bf16.msra.mxu0 0
        %2027 = vmatprep.subr.bf16.mxu0 0
        %2028 = vmatpush2.bf16.msra.mxu0 0
        %2029 = vmatprep.mubr.bf16.mxu0 0
        %2030 = vmatmul.mubr.bf16.gmra.mxu0 %v1992
        %v2031 = vpop.f32.mrf.mxu0
        %v2032 = vadd.f32 0.0, %v2031
        %v2033 = vpop.f32.mrf.mxu0
        %v2034 = vpop.f32.mrf.mxu0
        %v2035 = vpop.f32.mrf.mxu0
        %2036 = vdwg.mxu0
        %v2038 = vsel %vm1509, %v1939, 0
        %v2041 = vsel %vm1755, %v1943, 0
        %2043 = vmatprep.subr.bf16.mxu0 0
        %2044 = vmatpush1.bf16.msra.mxu0 0
        %2045 = vmatprep.subr.bf16.mxu0 0
        %2046 = vmatpush1.bf16.msra.mxu0 0
        %2047 = vmatprep.subr.bf16.mxu0 0
        %2048 = vmatpush1.bf16.msra.mxu0 0
        %2049 = vmatprep.subr.bf16.mxu0 0
        %2050 = vmatpush1.bf16.msra.mxu0 0
        %2051 = vmatprep.subr.bf16.mxu0 0
        %2052 = vmatpush1.bf16.msra.mxu0 0
        %2053 = vmatprep.subr.bf16.mxu0 0
        %2054 = vmatpush1.bf16.msra.mxu0 0
        %2055 = vmatprep.subr.bf16.mxu0 0
        %2056 = vmatpush1.bf16.msra.mxu0 0
        %2057 = vmatprep.subr.bf16.mxu0 0
        %2058 = vmatpush1.bf16.msra.mxu0 %v2041
        %2059 = vmatprep.subr.bf16.mxu0 0
        %2060 = vmatpush2.bf16.msra.mxu0 0
        %2061 = vmatprep.subr.bf16.mxu0 0
        %2062 = vmatpush2.bf16.msra.mxu0 0
        %2063 = vmatprep.subr.bf16.mxu0 0
        %2064 = vmatpush2.bf16.msra.mxu0 0
        %2065 = vmatprep.subr.bf16.mxu0 0
        %2066 = vmatpush2.bf16.msra.mxu0 0
        %2067 = vmatprep.subr.bf16.mxu0 0
        %2068 = vmatpush2.bf16.msra.mxu0 0
        %2069 = vmatprep.subr.bf16.mxu0 0
        %2070 = vmatpush2.bf16.msra.mxu0 0
        %2071 = vmatprep.subr.bf16.mxu0 0
        %2072 = vmatpush2.bf16.msra.mxu0 0
        %2073 = vmatprep.subr.bf16.mxu0 0
        %2074 = vmatpush2.bf16.msra.mxu0 0
        %2075 = vmatprep.mubr.bf16.mxu0 0
        %2076 = vmatmul.mubr.bf16.gmra.mxu0 %v2038
        %v2077 = vpop.f32.mrf.mxu0
        %v2078 = vadd.f32 0.0, %v2077
        %v2079 = vpop.f32.mrf.mxu0
        %v2080 = vpop.f32.mrf.mxu0
        %v2081 = vpop.f32.mrf.mxu0
        %2082 = vdwg.mxu0
        %v2084 = vsel %vm1509, %v1940, 0
        %v2087 = vsel %vm1755, %v1944, 0
        %2089 = vmatprep.subr.bf16.mxu0 0
        %2090 = vmatpush1.bf16.msra.mxu0 0
        %2091 = vmatprep.subr.bf16.mxu0 0
        %2092 = vmatpush1.bf16.msra.mxu0 0
        %2093 = vmatprep.subr.bf16.mxu0 0
        %2094 = vmatpush1.bf16.msra.mxu0 0
        %2095 = vmatprep.subr.bf16.mxu0 0
        %2096 = vmatpush1.bf16.msra.mxu0 0
        %2097 = vmatprep.subr.bf16.mxu0 0
        %2098 = vmatpush1.bf16.msra.mxu0 0
        %2099 = vmatprep.subr.bf16.mxu0 0
        %2100 = vmatpush1.bf16.msra.mxu0 0
        %2101 = vmatprep.subr.bf16.mxu0 0
        %2102 = vmatpush1.bf16.msra.mxu0 0
        %2103 = vmatprep.subr.bf16.mxu0 0
        %2104 = vmatpush1.bf16.msra.mxu0 %v2087
        %2105 = vmatprep.subr.bf16.mxu0 0
        %2106 = vmatpush2.bf16.msra.mxu0 0
        %2107 = vmatprep.subr.bf16.mxu0 0
        %2108 = vmatpush2.bf16.msra.mxu0 0
        %2109 = vmatprep.subr.bf16.mxu0 0
        %2110 = vmatpush2.bf16.msra.mxu0 0
        %2111 = vmatprep.subr.bf16.mxu0 0
        %2112 = vmatpush2.bf16.msra.mxu0 0
        %2113 = vmatprep.subr.bf16.mxu0 0
        %2114 = vmatpush2.bf16.msra.mxu0 0
        %2115 = vmatprep.subr.bf16.mxu0 0
        %2116 = vmatpush2.bf16.msra.mxu0 0
        %2117 = vmatprep.subr.bf16.mxu0 0
        %2118 = vmatpush2.bf16.msra.mxu0 0
        %2119 = vmatprep.subr.bf16.mxu0 0
        %2120 = vmatpush2.bf16.msra.mxu0 0
        %2121 = vmatprep.mubr.bf16.mxu0 0
        %2122 = vmatmul.mubr.bf16.gmra.mxu0 %v2084
        %v2123 = vpop.f32.mrf.mxu0
        %v2124 = vadd.f32 0.0, %v2123
        %v2125 = vpop.f32.mrf.mxu0
        %v2126 = vpop.f32.mrf.mxu0
        %v2127 = vpop.f32.mrf.mxu0
        %2128 = vdwg.mxu0
        %v2129 = vsel %vm880, %v1986, 0.0
        %v2130 = vsel %vm880, %v2032, 0.0
        %v2131 = vadd.f32 %v2129, %v2130
        %v2132 = vsel %vm880, %v2078, 0.0
        %v2133 = vadd.f32 %v2131, %v2132
        %v2134 = vsel %vm880, %v2124, 0.0
        %v2135 = vadd.f32 %v2133, %v2134
        %v2136 = vld [vmem:[%s695] sm:$0x1]
        %v2138 = vlaneseq
        %v2139 = vshrl.u32 %v2138, 7
        %v2140 = vsub.s32 0, %v2139
        %v2141 = vrot.slane %v2136, %v2140
        %v2143 = vadd.f32 %v2135, %v2141
        %v2144 = vadd.f32 %v734, %v2143
        %v2145 = vsel %vm880, %v2144, 0.0
        %2146 = vadd.xlane.f32.xlu0 %v2145
        %v2147 = vpop.xlane.xlu0 %2146
        %v2148 = vrcp.pop 32.0
        %v2149 = vmul.f32 %v2147, %v2148
        %v2150 = vsub.f32 %v2144, %v2149
        %v2151 = vmul.f32 %v2150, %v2150
        %v2152 = vsel %vm880, %v2151, 0.0
        %2153 = vadd.xlane.f32.xlu0 %v2152
        %v2154 = vpop.xlane.xlu0 %2153
        %v2155 = vmul.f32 %v2154, %v2148
        %v2156 = vadd.f32 %v2155, 1e-05
        %v2157 = vrsqrt.pop %v2156
        %v2158 = vmul.f32 %v2150, %v2157
        %v2159 = vld [vmem:[%s698] sm:$0x1]
        %v2161 = vlaneseq
        %v2162 = vshrl.u32 %v2161, 7
        %v2163 = vsub.s32 0, %v2162
        %v2164 = vrot.slane %v2159, %v2163
        %v2166 = vmul.f32 %v2158, %v2164
        %v2167 = vld [vmem:[%s701] sm:$0x1]
        %v2169 = vlaneseq
        %v2170 = vshrl.u32 %v2169, 7
        %v2171 = vsub.s32 0, %v2170
        %v2172 = vrot.slane %v2167, %v2171
        %v2174 = vadd.f32 %v2166, %v2172
        %v2175 = vpack.c.bf16 %v2174, %v2174
        %v2176 = vld [vmem:[%s706] sm:$0xf]
        %v2177 = vld [vmem:[%s706 + $0x4] sm:$0xf]
        %v2178 = vld [vmem:[%s706 + $0x8] sm:$0xf]
        %v2179 = vld [vmem:[%s706 + $0xc] sm:$0xf]
        %v2180 = vld [vmem:[%s709] sm:$0x1]
        %v2182 = vlaneseq
        %v2183 = vshrl.u32 %v2182, 7
        %v2184 = vsub.s32 0, %v2183
        %v2185 = vrot.slane %v2180, %v2184
        %v2191 = vunpack.c.l.b16 %v2176
        %v2192 = vunpack.c.l.b16 %v2177
        %v2193 = vunpack.c.l.b16 %v2178
        %v2194 = vunpack.c.l.b16 %v2179
        %v2195 = vpack.c.b16 %v2192, %v2191
        %v2196 = vpack.c.b16 %v2194, %v2193
        %v2200 = vsel %vm880, %v2175, 0
        %2202 = vmatprep.subr.bf16.mxu0 0
        %2203 = vmatpush1.bf16.msra.mxu0 0
        %2204 = vmatprep.subr.bf16.mxu0 0
        %2205 = vmatpush1.bf16.msra.mxu0 0
        %2206 = vmatprep.subr.bf16.mxu0 0
        %2207 = vmatpush1.bf16.msra.mxu0 0
        %2208 = vmatprep.subr.bf16.mxu0 0
        %2209 = vmatpush1.bf16.msra.mxu0 0
        %2210 = vmatprep.subr.bf16.mxu0 0
        %2211 = vmatpush1.bf16.msra.mxu0 0
        %2212 = vmatprep.subr.bf16.mxu0 0
        %2213 = vmatpush1.bf16.msra.mxu0 0
        %2214 = vmatprep.subr.bf16.mxu0 0
        %2215 = vmatpush1.bf16.msra.mxu0 %v2196
        %2216 = vmatprep.subr.bf16.mxu0 0
        %2217 = vmatpush1.bf16.msra.mxu0 %v2195
        %2218 = vmatprep.subr.bf16.mxu0 0
        %2219 = vmatpush2.bf16.msra.mxu0 0
        %2220 = vmatprep.subr.bf16.mxu0 0
        %2221 = vmatpush2.bf16.msra.mxu0 0
        %2222 = vmatprep.subr.bf16.mxu0 0
        %2223 = vmatpush2.bf16.msra.mxu0 0
        %2224 = vmatprep.subr.bf16.mxu0 0
        %2225 = vmatpush2.bf16.msra.mxu0 0
        %2226 = vmatprep.subr.bf16.mxu0 0
        %2227 = vmatpush2.bf16.msra.mxu0 0
        %2228 = vmatprep.subr.bf16.mxu0 0
        %2229 = vmatpush2.bf16.msra.mxu0 0
        %2230 = vmatprep.subr.bf16.mxu0 0
        %2231 = vmatpush2.bf16.msra.mxu0 0
        %2232 = vmatprep.subr.bf16.mxu0 0
        %2233 = vmatpush2.bf16.msra.mxu0 0
        %2234 = vmatprep.mubr.bf16.mxu0 0
        %2235 = vmatmul.mubr.bf16.gmra.mxu0 %v2200
        %v2236 = vpop.f32.mrf.mxu0
        %v2237 = vadd.f32 %v2185, %v2236
        %v2238 = vpop.f32.mrf.mxu0
        %v2239 = vpop.f32.mrf.mxu0
        %v2240 = vpop.f32.mrf.mxu0
        %2241 = vdwg.mxu0
        %v2242 = vmax.f32 %v2237, 0.0
        %v2243 = vpack.c.bf16 %v2242, %v2242
        %v2244 = vld [vmem:[%s714] sm:$0xf]
        %v2245 = vld [vmem:[%s714 + $0x4] sm:$0xf]
        %v2246 = vld [vmem:[%s714 + $0x8] sm:$0xf]
        %v2247 = vld [vmem:[%s714 + $0xc] sm:$0xf]
        %v2248 = vld [vmem:[%s714 + $0x10] sm:$0xf]
        %v2249 = vld [vmem:[%s714 + $0x14] sm:$0xf]
        %v2250 = vld [vmem:[%s714 + $0x18] sm:$0xf]
        %v2251 = vld [vmem:[%s714 + $0x1c] sm:$0xf]
        %v2252 = vld [vmem:[%s717] sm:$0x1]
        %v2254 = vlaneseq
        %v2255 = vshrl.u32 %v2254, 7
        %v2256 = vsub.s32 0, %v2255
        %v2257 = vrot.slane %v2252, %v2256
        %v2267 = vunpack.c.l.b16 %v2244
        %v2268 = vunpack.c.l.b16 %v2245
        %v2269 = vunpack.c.l.b16 %v2246
        %v2270 = vunpack.c.l.b16 %v2247
        %v2271 = vunpack.c.l.b16 %v2248
        %v2272 = vunpack.c.l.b16 %v2249
        %v2273 = vunpack.c.l.b16 %v2250
        %v2274 = vunpack.c.l.b16 %v2251
        %v2275 = vpack.c.b16 %v2268, %v2267
        %v2276 = vpack.c.b16 %v2270, %v2269
        %v2277 = vpack.c.b16 %v2272, %v2271
        %v2278 = vpack.c.b16 %v2274, %v2273
        %vm2283 = vcmask 523264
        %v2285 = vsel %vm2283, %v2243, 0
        %2287 = vmatprep.subr.bf16.mxu0 0
        %2288 = vmatpush1.bf16.msra.mxu0 0
        %2289 = vmatprep.subr.bf16.mxu0 0
        %2290 = vmatpush1.bf16.msra.mxu0 0
        %2291 = vmatprep.subr.bf16.mxu0 0
        %2292 = vmatpush1.bf16.msra.mxu0 0
        %2293 = vmatprep.subr.bf16.mxu0 0
        %2294 = vmatpush1.bf16.msra.mxu0 0
        %2295 = vmatprep.subr.bf16.mxu0 0
        %2296 = vmatpush1.bf16.msra.mxu0 %v2278
        %2297 = vmatprep.subr.bf16.mxu0 0
        %2298 = vmatpush1.bf16.msra.mxu0 %v2277
        %2299 = vmatprep.subr.bf16.mxu0 0
        %2300 = vmatpush1.bf16.msra.mxu0 %v2276
        %2301 = vmatprep.subr.bf16.mxu0 0
        %2302 = vmatpush1.bf16.msra.mxu0 %v2275
        %2303 = vmatprep.subr.bf16.mxu0 0
        %2304 = vmatpush2.bf16.msra.mxu0 0
        %2305 = vmatprep.subr.bf16.mxu0 0
        %2306 = vmatpush2.bf16.msra.mxu0 0
        %2307 = vmatprep.subr.bf16.mxu0 0
        %2308 = vmatpush2.bf16.msra.mxu0 0
        %2309 = vmatprep.subr.bf16.mxu0 0
        %2310 = vmatpush2.bf16.msra.mxu0 0
        %2311 = vmatprep.subr.bf16.mxu0 0
        %2312 = vmatpush2.bf16.msra.mxu0 0
        %2313 = vmatprep.subr.bf16.mxu0 0
        %2314 = vmatpush2.bf16.msra.mxu0 0
        %2315 = vmatprep.subr.bf16.mxu0 0
        %2316 = vmatpush2.bf16.msra.mxu0 0
        %2317 = vmatprep.subr.bf16.mxu0 0
        %2318 = vmatpush2.bf16.msra.mxu0 0
        %2319 = vmatprep.mubr.bf16.mxu0 0
        %2320 = vmatmul.mubr.bf16.gmra.mxu0 %v2285
        %v2321 = vpop.f32.mrf.mxu0
        %v2322 = vadd.f32 %v2257, %v2321
        %v2323 = vpop.f32.mrf.mxu0
        %v2324 = vpop.f32.mrf.mxu0
        %v2325 = vpop.f32.mrf.mxu0
        %2326 = vdwg.mxu0
        %v2327 = vadd.f32 %v2174, %v2322
        %v2328 = vsel %vm880, %v2327, 0.0
        %2329 = vadd.xlane.f32.xlu0 %v2328
        %v2330 = vpop.xlane.xlu0 %2329
        %v2331 = vmul.f32 %v2330, %v2148
        %v2332 = vsub.f32 %v2327, %v2331
        %v2333 = vmul.f32 %v2332, %v2332
        %v2334 = vsel %vm880, %v2333, 0.0
        %2335 = vadd.xlane.f32.xlu0 %v2334
        %v2336 = vpop.xlane.xlu0 %2335
        %v2337 = vmul.f32 %v2336, %v2148
        %v2338 = vadd.f32 %v2337, 1e-05
        %v2339 = vrsqrt.pop %v2338
        %v2340 = vmul.f32 %v2332, %v2339
        %v2341 = vld [vmem:[%s720] sm:$0x1]
        %v2343 = vlaneseq
        %v2344 = vshrl.u32 %v2343, 7
        %v2345 = vsub.s32 0, %v2344
        %v2346 = vrot.slane %v2341, %v2345
        %v2348 = vmul.f32 %v2340, %v2346
        %v2349 = vld [vmem:[%s723] sm:$0x1]
        %v2351 = vlaneseq
        %v2352 = vshrl.u32 %v2351, 7
        %v2353 = vsub.s32 0, %v2352
        %v2354 = vrot.slane %v2349, %v2353
        %v2356 = vadd.f32 %v2348, %v2354
        %2357 = vst.msk [vmem:[#allocation2] sm:$0xff] %vm880, %v2356
        %p2358 = scmp.eq.s32.totalorder %s35, 1
        // Predicated region
        $region89: #{one_tower_lcm_forward.1} parent=83 // pred_check
          %p2359 = pneg %p2358
        $region90: #{one_tower_lcm_forward.1} parent=83 // pred_check_branch
          %2361 = sbr.rel (%p2359) target = $region92
        $region91: #{one_tower_lcm_forward.1} parent=83 // pred_region
          %v2362 = vpack.c.bf16 %v2356, %v2356
          %v2363 = vld [vmem:[%s14] sm:$0xf]
          %v2364 = vld [vmem:[%s14 + $0x4] sm:$0xf]
          %v2365 = vld [vmem:[%s14 + $0x8] sm:$0xf]
          %v2366 = vld [vmem:[%s14 + $0xc] sm:$0xf]
          %v2367 = vld [vmem:[%s15] sm:$0x1]
          %v2369 = vlaneseq
          %v2370 = vshrl.u32 %v2369, 7
          %v2371 = vsub.s32 0, %v2370
          %v2372 = vrot.slane %v2367, %v2371
          %v2378 = vunpack.c.l.b16 %v2363
          %v2379 = vunpack.c.l.b16 %v2364
          %v2380 = vunpack.c.l.b16 %v2365
          %v2381 = vunpack.c.l.b16 %v2366
          %v2382 = vpack.c.b16 %v2379, %v2378
          %v2383 = vpack.c.b16 %v2381, %v2380
          %v2387 = vsel %vm880, %v2362, 0
          %2389 = vmatprep.subr.bf16.mxu0 0
          %2390 = vmatpush1.bf16.msra.mxu0 0
          %2391 = vmatprep.subr.bf16.mxu0 0
          %2392 = vmatpush1.bf16.msra.mxu0 0
          %2393 = vmatprep.subr.bf16.mxu0 0
          %2394 = vmatpush1.bf16.msra.mxu0 0
          %2395 = vmatprep.subr.bf16.mxu0 0
          %2396 = vmatpush1.bf16.msra.mxu0 0
          %2397 = vmatprep.subr.bf16.mxu0 0
          %2398 = vmatpush1.bf16.msra.mxu0 0
          %2399 = vmatprep.subr.bf16.mxu0 0
          %2400 = vmatpush1.bf16.msra.mxu0 0
          %2401 = vmatprep.subr.bf16.mxu0 0
          %2402 = vmatpush1.bf16.msra.mxu0 %v2383
          %2403 = vmatprep.subr.bf16.mxu0 0
          %2404 = vmatpush1.bf16.msra.mxu0 %v2382
          %2405 = vmatprep.subr.bf16.mxu0 0
          %2406 = vmatpush2.bf16.msra.mxu0 0
          %2407 = vmatprep.subr.bf16.mxu0 0
          %2408 = vmatpush2.bf16.msra.mxu0 0
          %2409 = vmatprep.subr.bf16.mxu0 0
          %2410 = vmatpush2.bf16.msra.mxu0 0
          %2411 = vmatprep.subr.bf16.mxu0 0
          %2412 = vmatpush2.bf16.msra.mxu0 0
          %2413 = vmatprep.subr.bf16.mxu0 0
          %2414 = vmatpush2.bf16.msra.mxu0 0
          %2415 = vmatprep.subr.bf16.mxu0 0
          %2416 = vmatpush2.bf16.msra.mxu0 0
          %2417 = vmatprep.subr.bf16.mxu0 0
          %2418 = vmatpush2.bf16.msra.mxu0 0
          %2419 = vmatprep.subr.bf16.mxu0 0
          %2420 = vmatpush2.bf16.msra.mxu0 0
          %2421 = vmatprep.mubr.bf16.mxu0 0
          %2422 = vmatmul.mubr.bf16.gmra.mxu0 %v2387
          %v2423 = vpop.f32.mrf.mxu0
          %v2424 = vadd.f32 %v2372, %v2423
          %v2425 = vpop.f32.mrf.mxu0
          %v2426 = vpop.f32.mrf.mxu0
          %v2427 = vpop.f32.mrf.mxu0
          %2428 = vdwg.mxu0
          %2429 = vst.msk [vmem:[%s674] sm:$0xff] %vm880, %v2424
        $region92: #{one_tower_lcm_forward.1} parent=83 // pred_fallthru
          _
        %s2430 = sand.u32 %s451, 1
        %s2431 = scalar_lea.sflag [#allocation4], %s2430
        %s2432 = sand.u32 %s451, 1
        %s2433 = smul.addr %s2432, 8
        %s2434 = scalar_lea.vmem [#allocation3], %s2433
        // Predicated region
        $region93: #{one_tower_lcm_forward.1} parent=83 // pred_check
          %p2435 = pneg %p461
        $region94: #{one_tower_lcm_forward.1} parent=83 // pred_check_branch
          %2437 = sbr.rel (%p2435) target = $region96
        $region95: #{one_tower_lcm_forward.1} parent=83 // pred_region
          %s2439 = ssub.s32 128, 128
          %2440 = vsyncadd %s2431, %s2439
          %s2441 = smul.addr %s34, 128
          %s2442 = scalar_lea.hbm %s16, %s2441
          %s2444 = sshll.u32 %s2434, 4
          %s2445 = int_to_ptr.vmem [resolvable:$true] %s2444
          %2447 = dma.vmem_to_hbm [thread:$0]  %s2445, 128, %s2442, %s2431
        $region96: #{one_tower_lcm_forward.1} parent=83 // pred_fallthru
          _
      $region84: #{one_tower_lcm_forward.1} parent=5 // pred_fallthru
        _
      %p2448 = scmp.le.s32.totalorder 2, %s25
      // Predicated region
      $region97: #{one_tower_lcm_forward.1} parent=5 // pred_check
        %p2449 = pneg %p2448
      $region98: #{one_tower_lcm_forward.1} parent=5 // pred_check_branch
        %2451 = sbr.rel (%p2449) target = $region100
      $region99: #{one_tower_lcm_forward.1} parent=5 // pred_region
        %s2452 = ssub.s32 %s25, 2
        // Predicated region
        $region101: #{one_tower_lcm_forward.1} parent=99 // pred_check
          %p2453 = pneg %p467
        $region102: #{one_tower_lcm_forward.1} parent=99 // pred_check_branch
          %2455 = sbr.rel (%p2453) target = $region104
        $region103: #{one_tower_lcm_forward.1} parent=99 // pred_region
          %s2456 = sand.u32 %s452, 1
          %s2457 = scalar_lea.sflag [#allocation4], %s2456
          %s2458 = sand.u32 %s452, 1
          %s2459 = smul.addr %s2458, 8
          %s2460 = scalar_lea.vmem [#allocation3], %s2459
          %2461 = dma.done %s2457, 128
        $region104: #{one_tower_lcm_forward.1} parent=99 // pred_fallthru
          _
      $region100: #{one_tower_lcm_forward.1} parent=5 // pred_fallthru
        _
    $region6: #{one_tower_lcm_forward.1} parent=1 // loop_footer
      %s29 = sadd.s32 1, %s25
    $region7: #{one_tower_lcm_forward.1} parent=1 // loop_footer_branch
      %24 = sbr.rel target = $region3
    $region8: #{one_tower_lcm_forward.1} parent=1 // loop_exit
      _
    %2462 = vsyncpa [#allocation4], 1
    %s2463 = scalar_lea.sflag [#allocation4], 1
    %2464 = vsyncpa %s2463, 1

</llo_original>
